<compile_context>
chip_gen: v7x
topology: tpu7x:2x2x1
jax: 0.10.0
libtpu: 0.0.40
codegen_flags: <defaults>
</compile_context>

<pallas_src>
import functools

import jax
import jax.numpy as jnp
from jax import lax
from jax.experimental import pallas as pl
from jax.experimental.pallas import tpu as pltpu


def _mlp_kernel(hs_ref, hd_ref, w1a_ref, w1b_ref, b1_ref, w2t_ref, b2_ref,
                o_ref, *, c_is_one):
    # hs/hd:    (TE, F) bf16 src/dst edge-endpoint features for this tile
    # w1a/w1b:  (F, F) bf16 halves of the first Linear's weight
    # b1:       (1, F) f32;  w2t: (C, F) bf16;  b2: (1, C) f32
    z1 = jnp.dot(hs_ref[...], w1a_ref[...], preferred_element_type=jnp.float32)
    z1 = z1 + jnp.dot(hd_ref[...], w1b_ref[...],
                      preferred_element_type=jnp.float32)
    z1 = z1 + b1_ref[...]
    a1 = jnp.maximum(z1, 0.0).astype(jnp.bfloat16)   # ReLU, back to MXU dtype

    if c_is_one:
        # (1, F) x (TE, F) contracted on F -> (1, TE): lane-dense output row.
        z2 = lax.dot_general(w2t_ref[...], a1, (((1,), (1,)), ((), ())),
                             preferred_element_type=jnp.float32)
        z2 = z2 + b2_ref[...]                       # (1, 1) bias broadcast
        o_ref[...] = z2[None].astype(o_ref.dtype)   # (1, 1, TE) block
    else:
        # (TE, F) x (C, F) contracted on F -> (TE, C), bf16 MXU pass.
        z2 = lax.dot_general(a1, w2t_ref[...], (((1,), (1,)), ((), ())),
                             preferred_element_type=jnp.float32)
        z2 = z2 + b2_ref[...]
        o_ref[...] = z2.astype(o_ref.dtype)


def mlp_predictor_forward(x, edge_index, params, *, tile_e=512):
    """Pallas forward of MLPPredictor(h_feats, num_classes, num_layers=2).

    x:          (N, F) float32 node embeddings
    edge_index: (2, E) int32 edge endpoints
    params:     dict with w1 (2F, F), b1 (F,), w2 (F, C), b2 (C,)
    returns:    (E,) if C == 1 (matches torch .squeeze(1)), else (E, C)
    """
    w1, b1, w2, b2 = params["w1"], params["b1"], params["w2"], params["b2"]
    F2, F = w1.shape
    C = w2.shape[1]
    assert F2 == 2 * F

    E = edge_index.shape[1]
    num_tiles = pl.cdiv(E, tile_e)
    E_pad = num_tiles * tile_e

    # Pad only the tiny index vectors; the gather below then produces the
    # padded (E_pad, F) streams directly (no extra pass over feature data).
    src, dst = edge_index[0], edge_index[1]
    if E_pad != E:
        src = jnp.pad(src, (0, E_pad - E))
        dst = jnp.pad(dst, (0, E_pad - E))

    # Row gather + bf16 cast (XLA fuses the cast into the gather output).
    hs = x[src].astype(jnp.bfloat16)
    hd = x[dst].astype(jnp.bfloat16)

    # Split the first-layer weight so no (E, 2F) concat is ever materialized.
    w1a = w1[:F, :].astype(jnp.bfloat16)     # multiplies x[src]
    w1b = w1[F:, :].astype(jnp.bfloat16)     # multiplies x[dst]
    b1_2d = b1.reshape(1, F).astype(jnp.float32)
    w2t = w2.T.astype(jnp.bfloat16)          # (C, F)
    b2_2d = b2.reshape(1, C).astype(jnp.float32)

    grid = (num_tiles,)
    kernel = functools.partial(_mlp_kernel, c_is_one=(C == 1))

    in_specs = [
        pl.BlockSpec((tile_e, F), lambda i: (i, 0)),   # hs tile   (streamed)
        pl.BlockSpec((tile_e, F), lambda i: (i, 0)),   # hd tile   (streamed)
        pl.BlockSpec((F, F), lambda i: (0, 0)),        # w1a       (resident)
        pl.BlockSpec((F, F), lambda i: (0, 0)),        # w1b       (resident)
        pl.BlockSpec((1, F), lambda i: (0, 0)),        # b1
        pl.BlockSpec((C, F), lambda i: (0, 0)),        # w2^T
        pl.BlockSpec((1, C), lambda i: (0, 0)),        # b2
    ]

    if C == 1:
        # Lane-dense writeback: one (1, tile_e) f32 row per tile.
        out_shape = jax.ShapeDtypeStruct((num_tiles, 1, tile_e), jnp.float32)
        out_specs = pl.BlockSpec((1, 1, tile_e), lambda i: (i, 0, 0))
        out_block_bytes = tile_e * 4
    else:
        out_shape = jax.ShapeDtypeStruct((E_pad, C), jnp.float32)
        out_specs = pl.BlockSpec((tile_e, C), lambda i: (i, 0))
        out_block_bytes = tile_e * C * 4

    # Explicit VMEM budget: double-buffered streams + resident weights + out.
    vmem_est = (2 * 2 * tile_e * F * 2          # hs, hd (bf16, double-buffered)
                + 2 * 2 * F * F * 2             # w1a, w1b (bf16)
                + 2 * C * F * 2                 # w2^T
                + 2 * out_block_bytes
                + (1 << 20))                    # headroom (biases, scratch)
    vmem_limit = int(min(64 << 20, max(32 << 20, 2 * vmem_est)))

    cost = pl.CostEstimate(
        flops=2 * E_pad * (2 * F) * F + 2 * E_pad * F * C,
        transcendentals=0,
        bytes_accessed=(2 * E_pad * F * 2 + 2 * F * F * 2 + C * F * 2
                        + F * 4 + C * 4 + E_pad * C * 4),
    )

    out = pl.pallas_call(
        kernel,
        out_shape=out_shape,
        grid_spec=pltpu.PrefetchScalarGridSpec(
            num_scalar_prefetch=0,
            grid=grid,
            in_specs=in_specs,
            out_specs=out_specs,
        ),
        compiler_params=pltpu.CompilerParams(
            dimension_semantics=("parallel",),
            vmem_limit_bytes=vmem_limit,
        ),
        cost_estimate=cost,
    )(hs, hd, w1a, w1b, b1_2d, w2t, b2_2d)

    if C == 1:
        return out.reshape(-1)[:E]   # matches torch h.squeeze(1)
    return out[:E]


def init_params(key, h_feats, num_classes=1):
    """Deterministic synthetic init mirroring the nn.Linear shapes."""
    in_feats = h_feats * 2
    k1, k2, k3, k4 = jax.random.split(key, 4)
    s1 = 1.0 / jnp.sqrt(in_feats)
    s2 = 1.0 / jnp.sqrt(h_feats)
    return {
        # stored as (in, out) for row-major matmul inside the kernel
        "w1": jax.random.uniform(k1, (in_feats, h_feats), jnp.float32, -s1, s1),
        "b1": jax.random.uniform(k2, (h_feats,), jnp.float32, -s1, s1),
        "w2": jax.random.uniform(k3, (h_feats, num_classes), jnp.float32, -s2, s2),
        "b2": jax.random.uniform(k4, (num_classes,), jnp.float32, -s2, s2),
    }


def _reference_forward(x, edge_index, params):
    # Reference using the same bf16-quantized operands as the kernel (exact
    # upcast), with f32 accumulation -> tight comparison is valid.
    hs = x[edge_index[0]].astype(jnp.bfloat16).astype(jnp.float32)
    hd = x[edge_index[1]].astype(jnp.bfloat16).astype(jnp.float32)
    w1 = params["w1"].astype(jnp.bfloat16).astype(jnp.float32)
    w2 = params["w2"].astype(jnp.bfloat16).astype(jnp.float32)
    h = jnp.concatenate([hs, hd], axis=-1)
    h = jnp.maximum(h @ w1 + params["b1"], 0.0)
    h = h.astype(jnp.bfloat16).astype(jnp.float32)
    h = h @ w2 + params["b2"]
    return h[:, 0] if h.shape[1] == 1 else h


if __name__ == "__main__":
    h_feats = 32
    num_classes = 1
    num_nodes = 16
    num_edges = 8

    key = jax.random.PRNGKey(0)
    kx, ke, kp = jax.random.split(key, 3)

    x = jax.random.normal(kx, (num_nodes, h_feats), dtype=jnp.float32)
    edge_index = jax.random.randint(ke, (2, num_edges), 0, num_nodes,
                                    dtype=jnp.int32)
    params = init_params(kp, h_feats, num_classes)

    fwd = jax.jit(functools.partial(mlp_predictor_forward, tile_e=512))
    out = fwd(x, edge_index, params)
    out = jax.block_until_ready(out)

    ref = _reference_forward(x, edge_index, params)
    assert out.shape == (num_edges,), out.shape
    assert jnp.allclose(out, ref, atol=1e-3, rtol=1e-3), (out, ref)

    print("KERNEL_OK")
</pallas_src>

<mosaic_0001>
module attributes {stable_mosaic.version = 11 : i64} {
  func.func @_mlp_kernel(%arg0: i32, %arg1: memref<512x32xbf16, #tpu.memory_space<vmem>>, %arg2: memref<512x32xbf16, #tpu.memory_space<vmem>>, %arg3: memref<32x32xbf16, #tpu.memory_space<vmem>>, %arg4: memref<32x32xbf16, #tpu.memory_space<vmem>>, %arg5: memref<1x32xf32, #tpu.memory_space<vmem>>, %arg6: memref<1x32xbf16, #tpu.memory_space<vmem>>, %arg7: memref<1x1xf32, #tpu.memory_space<vmem>>, %arg8: memref<1x1x512xf32, #tpu.memory_space<vmem>>) attributes {dimension_semantics = [#tpu.dimension_semantics<parallel>], iteration_bounds = array<i64: 1>, scalar_prefetch = 0 : i64, scratch_operands = 0 : i64, tpu.core_type = #tpu.core_type<tc>, window_params = [{transform_indices = @transform_0, window_bounds = array<i64: 512, 32>}, {transform_indices = @transform_1, window_bounds = array<i64: 512, 32>}, {pipeline_mode = #tpu.pipeline_mode<synchronous>, transform_indices = @transform_2, window_bounds = array<i64: 32, 32>}, {pipeline_mode = #tpu.pipeline_mode<synchronous>, transform_indices = @transform_3, window_bounds = array<i64: 32, 32>}, {pipeline_mode = #tpu.pipeline_mode<synchronous>, transform_indices = @transform_4, window_bounds = array<i64: 1, 32>}, {pipeline_mode = #tpu.pipeline_mode<synchronous>, transform_indices = @transform_5, window_bounds = array<i64: 1, 32>}, {pipeline_mode = #tpu.pipeline_mode<synchronous>, transform_indices = @transform_6, window_bounds = array<i64: 1, 1>}, {transform_indices = @transform_7, window_bounds = array<i64: 1, 1, 512>}]} {
    %c0 = arith.constant 0 : index
    %c0_0 = arith.constant 0 : index
    %0 = vector.load %arg1[%c0, %c0_0] : memref<512x32xbf16, #tpu.memory_space<vmem>>, vector<512x32xbf16>
    %c0_1 = arith.constant 0 : index
    %c0_2 = arith.constant 0 : index
    %1 = vector.load %arg3[%c0_1, %c0_2] : memref<32x32xbf16, #tpu.memory_space<vmem>>, vector<32x32xbf16>
    %cst = arith.constant dense<0.000000e+00> : vector<512x32xf32>
    %2 = tpu.matmul %0, %1, %cst {dimension_numbers = #tpu.dot_dimension_numbers<[1], [0], [0], [1], [0, 0, 1, 1], [], []>} : vector<512x32xbf16>, vector<32x32xbf16>, vector<512x32xf32> -> vector<512x32xf32>
    %c0_3 = arith.constant 0 : index
    %c0_4 = arith.constant 0 : index
    %3 = vector.load %arg2[%c0_3, %c0_4] : memref<512x32xbf16, #tpu.memory_space<vmem>>, vector<512x32xbf16>
    %c0_5 = arith.constant 0 : index
    %c0_6 = arith.constant 0 : index
    %4 = vector.load %arg4[%c0_5, %c0_6] : memref<32x32xbf16, #tpu.memory_space<vmem>>, vector<32x32xbf16>
    %cst_7 = arith.constant dense<0.000000e+00> : vector<512x32xf32>
    %5 = tpu.matmul %3, %4, %cst_7 {dimension_numbers = #tpu.dot_dimension_numbers<[1], [0], [0], [1], [0, 0, 1, 1], [], []>} : vector<512x32xbf16>, vector<32x32xbf16>, vector<512x32xf32> -> vector<512x32xf32>
    %6 = arith.addf %2, %5 : vector<512x32xf32>
    %c0_8 = arith.constant 0 : index
    %c0_9 = arith.constant 0 : index
    %7 = vector.load %arg5[%c0_8, %c0_9] : memref<1x32xf32, #tpu.memory_space<vmem>>, vector<1x32xf32>
    %8 = vector.broadcast %7 : vector<1x32xf32> to vector<512x32xf32>
    %9 = arith.addf %6, %8 : vector<512x32xf32>
    %cst_10 = arith.constant 0.000000e+00 : f32
    %10 = vector.broadcast %cst_10 : f32 to vector<512x32xf32>
    %11 = arith.maximumf %9, %10 : vector<512x32xf32>
    %12 = arith.truncf %11 : vector<512x32xf32> to vector<512x32xbf16>
    %c0_11 = arith.constant 0 : index
    %c0_12 = arith.constant 0 : index
    %13 = vector.load %arg6[%c0_11, %c0_12] : memref<1x32xbf16, #tpu.memory_space<vmem>>, vector<1x32xbf16>
    %cst_13 = arith.constant dense<0.000000e+00> : vector<1x512xf32>
    %14 = tpu.matmul %13, %12, %cst_13 {dimension_numbers = #tpu.dot_dimension_numbers<[1], [1], [0], [0], [0, 0, 1, 0], [], []>} : vector<1x32xbf16>, vector<512x32xbf16>, vector<1x512xf32> -> vector<1x512xf32>
    %c0_14 = arith.constant 0 : index
    %c0_15 = arith.constant 0 : index
    %15 = vector.load %arg7[%c0_14, %c0_15] : memref<1x1xf32, #tpu.memory_space<vmem>>, vector<1x1xf32>
    %16 = vector.broadcast %15 : vector<1x1xf32> to vector<1x512xf32>
    %17 = arith.addf %14, %16 : vector<1x512xf32>
    %18 = vector.shape_cast %17 : vector<1x512xf32> to vector<1x1x512xf32>
    %c0_16 = arith.constant 0 : index
    %c0_17 = arith.constant 0 : index
    %c0_18 = arith.constant 0 : index
    %19 = vector.load %arg8[%c0_16, %c0_17, %c0_18] : memref<1x1x512xf32, #tpu.memory_space<vmem>>, vector<1x1x512xf32>
    tpu.vector_store %arg8[%c0_16, %c0_17, %c0_18], %18 {strides = array<i32>} : memref<1x1x512xf32, #tpu.memory_space<vmem>>, vector<1x1x512xf32>,
    return
  }
  func.func @transform_0(%arg0: i32) -> (i32, i32) {
    %c0_i32 = arith.constant 0 : i32
    %c0_i32_0 = arith.constant 0 : i32
    return %arg0, %c0_i32 : i32, i32
  }
  func.func @transform_1(%arg0: i32) -> (i32, i32) {
    %c0_i32 = arith.constant 0 : i32
    %c0_i32_0 = arith.constant 0 : i32
    return %arg0, %c0_i32 : i32, i32
  }
  func.func @transform_2(%arg0: i32) -> (i32, i32) {
    %c0_i32 = arith.constant 0 : i32
    %c0_i32_0 = arith.constant 0 : i32
    %c0_i32_1 = arith.constant 0 : i32
    return %c0_i32, %c0_i32_0 : i32, i32
  }
  func.func @transform_3(%arg0: i32) -> (i32, i32) {
    %c0_i32 = arith.constant 0 : i32
    %c0_i32_0 = arith.constant 0 : i32
    %c0_i32_1 = arith.constant 0 : i32
    return %c0_i32, %c0_i32_0 : i32, i32
  }
  func.func @transform_4(%arg0: i32) -> (i32, i32) {
    %c0_i32 = arith.constant 0 : i32
    %c0_i32_0 = arith.constant 0 : i32
    %c0_i32_1 = arith.constant 0 : i32
    return %c0_i32, %c0_i32_0 : i32, i32
  }
  func.func @transform_5(%arg0: i32) -> (i32, i32) {
    %c0_i32 = arith.constant 0 : i32
    %c0_i32_0 = arith.constant 0 : i32
    %c0_i32_1 = arith.constant 0 : i32
    return %c0_i32, %c0_i32_0 : i32, i32
  }
  func.func @transform_6(%arg0: i32) -> (i32, i32) {
    %c0_i32 = arith.constant 0 : i32
    %c0_i32_0 = arith.constant 0 : i32
    %c0_i32_1 = arith.constant 0 : i32
    return %c0_i32, %c0_i32_0 : i32, i32
  }
  func.func @transform_7(%arg0: i32) -> (i32, i32, i32) {
    %c0_i32 = arith.constant 0 : i32
    %c0_i32_0 = arith.constant 0 : i32
    %c0_i32_1 = arith.constant 0 : i32
    return %arg0, %c0_i32, %c0_i32_0 : i32, i32, i32
  }
}

</mosaic_0001>

<llo_original>
// kernel: mlp_predictor_forward.1
$region0: #{mlp_predictor_forward.1}
  #allocation0 [shape = 'u32[]', space=smem, size = 0x4, offset = 0x4, fixed_abs, tag = 'smem constant byte address 0x4 - core index']
  #allocation1 [shape = 'u32[144,128]{1,0:T(1,128)}', space=vmem, size = 0x12000, scoped, tag = 'internal scratch']
  #allocation2 [shape = 'f32[1,1]{1,0:T(1,128)S(1)}', space=vmem, size = 0x200, scoped, tag = 'scoped memory for mlp_predictor_forward.1']
  %s0 = inlined_call_operand.vmem [shape: bf16[512,32], index: 0, kind: input, shape index: {}]
  %s1 = inlined_call_operand.vmem [shape: bf16[512,32], index: 1, kind: input, shape index: {}]
  %s2 = inlined_call_operand.vmem [shape: bf16[32,32], index: 2, kind: input, shape index: {}]
  %s3 = inlined_call_operand.vmem [shape: bf16[32,32], index: 3, kind: input, shape index: {}]
  %s4 = inlined_call_operand.vmem [shape: f32[1,32], index: 4, kind: input, shape index: {}]
  %s5 = inlined_call_operand.vmem [shape: bf16[1,32], index: 5, kind: input, shape index: {}]
  %s6 = inlined_call_operand.<no memory space> [shape: f32[1,1], index: 6, kind: input, shape index: {}]
  %s7 = inlined_call_operand.vmem [shape: f32[1,1,512], index: 7, kind: output, shape index: {}]
  %s8 = sld [smem:[#allocation0]]
  $region38: #{mlp_predictor_forward.1} parent=0
    _
  %s10 = ssub.s32 1, %s8
  %s11 = scalar_select 0, %s10, %s8
  %v12 = vstv %s6
  %13 = vst [vmem:[#allocation2] sm:$0x1] %v12
  // Predicated region
  $region2: #{mlp_predictor_forward.1} parent=0 // pred_check
    _
  $region3: #{mlp_predictor_forward.1} parent=0 // pred_check_branch
    %15 = sbr.rel (0) target = $region5
  $region4: #{mlp_predictor_forward.1} parent=0 // pred_region
    _
  $region5: #{mlp_predictor_forward.1} parent=0 // pred_fallthru
    _
  // Predicated region
  $region6: #{mlp_predictor_forward.1} parent=0 // pred_check
    _
  $region7: #{mlp_predictor_forward.1} parent=0 // pred_check_branch
    %17 = sbr.rel (0) target = $region9
  $region8: #{mlp_predictor_forward.1} parent=0 // pred_region
    _
  $region9: #{mlp_predictor_forward.1} parent=0 // pred_fallthru
    _
  // Predicated region
  $region10: #{mlp_predictor_forward.1} parent=0 // pred_check
    _
  $region11: #{mlp_predictor_forward.1} parent=0 // pred_check_branch
    %19 = sbr.rel (0) target = $region13
  $region12: #{mlp_predictor_forward.1} parent=0 // pred_region
    _
  $region13: #{mlp_predictor_forward.1} parent=0 // pred_fallthru
    _
  // Predicated region
  $region14: #{mlp_predictor_forward.1} parent=0 // pred_check
    _
  $region15: #{mlp_predictor_forward.1} parent=0 // pred_check_branch
    %21 = sbr.rel (0) target = $region17
  $region16: #{mlp_predictor_forward.1} parent=0 // pred_region
    _
  $region17: #{mlp_predictor_forward.1} parent=0 // pred_fallthru
    _
  // Predicated region
  $region18: #{mlp_predictor_forward.1} parent=0 // pred_check
    _
  $region19: #{mlp_predictor_forward.1} parent=0 // pred_check_branch
    %23 = sbr.rel (0) target = $region21
  $region20: #{mlp_predictor_forward.1} parent=0 // pred_region
    _
  $region21: #{mlp_predictor_forward.1} parent=0 // pred_fallthru
    _
  // Predicated region
  $region22: #{mlp_predictor_forward.1} parent=0 // pred_check
    _
  $region23: #{mlp_predictor_forward.1} parent=0 // pred_check_branch
    %25 = sbr.rel (0) target = $region25
  $region24: #{mlp_predictor_forward.1} parent=0 // pred_region
    _
  $region25: #{mlp_predictor_forward.1} parent=0 // pred_fallthru
    _
  // Predicated region
  $region26: #{mlp_predictor_forward.1} parent=0 // pred_check
    _
  $region27: #{mlp_predictor_forward.1} parent=0 // pred_check_branch
    %27 = sbr.rel (0) target = $region29
  $region28: #{mlp_predictor_forward.1} parent=0 // pred_region
    _
  $region29: #{mlp_predictor_forward.1} parent=0 // pred_fallthru
    _
  %v29 = vld [vmem:[%s0] sm:$0xf]
  %v30 = vld [vmem:[%s0 + $0x4] sm:$0xf]
  %v31 = vld [vmem:[%s0 + $0x8] sm:$0xf]
  %v32 = vld [vmem:[%s0 + $0xc] sm:$0xf]
  %v33 = vld [vmem:[%s0 + $0x10] sm:$0xf]
  %v34 = vld [vmem:[%s0 + $0x14] sm:$0xf]
  %v35 = vld [vmem:[%s0 + $0x18] sm:$0xf]
  %v36 = vld [vmem:[%s0 + $0x1c] sm:$0xf]
  %v37 = vld [vmem:[%s0 + $0x20] sm:$0xf]
  %v38 = vld [vmem:[%s0 + $0x24] sm:$0xf]
  %v39 = vld [vmem:[%s0 + $0x28] sm:$0xf]
  %v40 = vld [vmem:[%s0 + $0x2c] sm:$0xf]
  %v41 = vld [vmem:[%s0 + $0x30] sm:$0xf]
  %v42 = vld [vmem:[%s0 + $0x34] sm:$0xf]
  %v43 = vld [vmem:[%s0 + $0x38] sm:$0xf]
  %v44 = vld [vmem:[%s0 + $0x3c] sm:$0xf]
  %v45 = vld [vmem:[%s0 + $0x40] sm:$0xf]
  %v46 = vld [vmem:[%s0 + $0x44] sm:$0xf]
  %v47 = vld [vmem:[%s0 + $0x48] sm:$0xf]
  %v48 = vld [vmem:[%s0 + $0x4c] sm:$0xf]
  %v49 = vld [vmem:[%s0 + $0x50] sm:$0xf]
  %v50 = vld [vmem:[%s0 + $0x54] sm:$0xf]
  %v51 = vld [vmem:[%s0 + $0x58] sm:$0xf]
  %v52 = vld [vmem:[%s0 + $0x5c] sm:$0xf]
  %v53 = vld [vmem:[%s0 + $0x60] sm:$0xf]
  %v54 = vld [vmem:[%s0 + $0x64] sm:$0xf]
  %v55 = vld [vmem:[%s0 + $0x68] sm:$0xf]
  %v56 = vld [vmem:[%s0 + $0x6c] sm:$0xf]
  %v57 = vld [vmem:[%s0 + $0x70] sm:$0xf]
  %v58 = vld [vmem:[%s0 + $0x74] sm:$0xf]
  %v59 = vld [vmem:[%s0 + $0x78] sm:$0xf]
  %v60 = vld [vmem:[%s0 + $0x7c] sm:$0xf]
  %v61 = vld [vmem:[%s0 + $0x80] sm:$0xf]
  %v62 = vld [vmem:[%s0 + $0x84] sm:$0xf]
  %v63 = vld [vmem:[%s0 + $0x88] sm:$0xf]
  %v64 = vld [vmem:[%s0 + $0x8c] sm:$0xf]
  %v65 = vld [vmem:[%s0 + $0x90] sm:$0xf]
  %v66 = vld [vmem:[%s0 + $0x94] sm:$0xf]
  %v67 = vld [vmem:[%s0 + $0x98] sm:$0xf]
  %v68 = vld [vmem:[%s0 + $0x9c] sm:$0xf]
  %v69 = vld [vmem:[%s0 + $0xa0] sm:$0xf]
  %v70 = vld [vmem:[%s0 + $0xa4] sm:$0xf]
  %v71 = vld [vmem:[%s0 + $0xa8] sm:$0xf]
  %v72 = vld [vmem:[%s0 + $0xac] sm:$0xf]
  %v73 = vld [vmem:[%s0 + $0xb0] sm:$0xf]
  %v74 = vld [vmem:[%s0 + $0xb4] sm:$0xf]
  %v75 = vld [vmem:[%s0 + $0xb8] sm:$0xf]
  %v76 = vld [vmem:[%s0 + $0xbc] sm:$0xf]
  %v77 = vld [vmem:[%s0 + $0xc0] sm:$0xf]
  %v78 = vld [vmem:[%s0 + $0xc4] sm:$0xf]
  %v79 = vld [vmem:[%s0 + $0xc8] sm:$0xf]
  %v80 = vld [vmem:[%s0 + $0xcc] sm:$0xf]
  %v81 = vld [vmem:[%s0 + $0xd0] sm:$0xf]
  %v82 = vld [vmem:[%s0 + $0xd4] sm:$0xf]
  %v83 = vld [vmem:[%s0 + $0xd8] sm:$0xf]
  %v84 = vld [vmem:[%s0 + $0xdc] sm:$0xf]
  %v85 = vld [vmem:[%s0 + $0xe0] sm:$0xf]
  %v86 = vld [vmem:[%s0 + $0xe4] sm:$0xf]
  %v87 = vld [vmem:[%s0 + $0xe8] sm:$0xf]
  %v88 = vld [vmem:[%s0 + $0xec] sm:$0xf]
  %v89 = vld [vmem:[%s0 + $0xf0] sm:$0xf]
  %v90 = vld [vmem:[%s0 + $0xf4] sm:$0xf]
  %v91 = vld [vmem:[%s0 + $0xf8] sm:$0xf]
  %v92 = vld [vmem:[%s0 + $0xfc] sm:$0xf]
  %v93 = vld [vmem:[%s2] sm:$0xf]
  %v94 = vld [vmem:[%s2 + $0x4] sm:$0xf]
  %v95 = vld [vmem:[%s2 + $0x8] sm:$0xf]
  %v96 = vld [vmem:[%s2 + $0xc] sm:$0xf]
  %v97 = vld [vmem:[%s1] sm:$0xf]
  %v98 = vld [vmem:[%s1 + $0x4] sm:$0xf]
  %v99 = vld [vmem:[%s1 + $0x8] sm:$0xf]
  %v100 = vld [vmem:[%s1 + $0xc] sm:$0xf]
  %v101 = vld [vmem:[%s1 + $0x10] sm:$0xf]
  %v102 = vld [vmem:[%s1 + $0x14] sm:$0xf]
  %v103 = vld [vmem:[%s1 + $0x18] sm:$0xf]
  %v104 = vld [vmem:[%s1 + $0x1c] sm:$0xf]
  %v105 = vld [vmem:[%s1 + $0x20] sm:$0xf]
  %v106 = vld [vmem:[%s1 + $0x24] sm:$0xf]
  %v107 = vld [vmem:[%s1 + $0x28] sm:$0xf]
  %v108 = vld [vmem:[%s1 + $0x2c] sm:$0xf]
  %v109 = vld [vmem:[%s1 + $0x30] sm:$0xf]
  %v110 = vld [vmem:[%s1 + $0x34] sm:$0xf]
  %v111 = vld [vmem:[%s1 + $0x38] sm:$0xf]
  %v112 = vld [vmem:[%s1 + $0x3c] sm:$0xf]
  %v113 = vld [vmem:[%s1 + $0x40] sm:$0xf]
  %v114 = vld [vmem:[%s1 + $0x44] sm:$0xf]
  %v115 = vld [vmem:[%s1 + $0x48] sm:$0xf]
  %v116 = vld [vmem:[%s1 + $0x4c] sm:$0xf]
  %v117 = vld [vmem:[%s1 + $0x50] sm:$0xf]
  %v118 = vld [vmem:[%s1 + $0x54] sm:$0xf]
  %v119 = vld [vmem:[%s1 + $0x58] sm:$0xf]
  %v120 = vld [vmem:[%s1 + $0x5c] sm:$0xf]
  %v121 = vld [vmem:[%s1 + $0x60] sm:$0xf]
  %v122 = vld [vmem:[%s1 + $0x64] sm:$0xf]
  %v123 = vld [vmem:[%s1 + $0x68] sm:$0xf]
  %v124 = vld [vmem:[%s1 + $0x6c] sm:$0xf]
  %v125 = vld [vmem:[%s1 + $0x70] sm:$0xf]
  %v126 = vld [vmem:[%s1 + $0x74] sm:$0xf]
  %v127 = vld [vmem:[%s1 + $0x78] sm:$0xf]
  %v128 = vld [vmem:[%s1 + $0x7c] sm:$0xf]
  %v129 = vld [vmem:[%s1 + $0x80] sm:$0xf]
  %v130 = vld [vmem:[%s1 + $0x84] sm:$0xf]
  %v131 = vld [vmem:[%s1 + $0x88] sm:$0xf]
  %v132 = vld [vmem:[%s1 + $0x8c] sm:$0xf]
  %v133 = vld [vmem:[%s1 + $0x90] sm:$0xf]
  %v134 = vld [vmem:[%s1 + $0x94] sm:$0xf]
  %v135 = vld [vmem:[%s1 + $0x98] sm:$0xf]
  %v136 = vld [vmem:[%s1 + $0x9c] sm:$0xf]
  %v137 = vld [vmem:[%s1 + $0xa0] sm:$0xf]
  %v138 = vld [vmem:[%s1 + $0xa4] sm:$0xf]
  %v139 = vld [vmem:[%s1 + $0xa8] sm:$0xf]
  %v140 = vld [vmem:[%s1 + $0xac] sm:$0xf]
  %v141 = vld [vmem:[%s1 + $0xb0] sm:$0xf]
  %v142 = vld [vmem:[%s1 + $0xb4] sm:$0xf]
  %v143 = vld [vmem:[%s1 + $0xb8] sm:$0xf]
  %v144 = vld [vmem:[%s1 + $0xbc] sm:$0xf]
  %v145 = vld [vmem:[%s1 + $0xc0] sm:$0xf]
  %v146 = vld [vmem:[%s1 + $0xc4] sm:$0xf]
  %v147 = vld [vmem:[%s1 + $0xc8] sm:$0xf]
  %v148 = vld [vmem:[%s1 + $0xcc] sm:$0xf]
  %v149 = vld [vmem:[%s1 + $0xd0] sm:$0xf]
  %v150 = vld [vmem:[%s1 + $0xd4] sm:$0xf]
  %v151 = vld [vmem:[%s1 + $0xd8] sm:$0xf]
  %v152 = vld [vmem:[%s1 + $0xdc] sm:$0xf]
  %v153 = vld [vmem:[%s1 + $0xe0] sm:$0xf]
  %v154 = vld [vmem:[%s1 + $0xe4] sm:$0xf]
  %v155 = vld [vmem:[%s1 + $0xe8] sm:$0xf]
  %v156 = vld [vmem:[%s1 + $0xec] sm:$0xf]
  %v157 = vld [vmem:[%s1 + $0xf0] sm:$0xf]
  %v158 = vld [vmem:[%s1 + $0xf4] sm:$0xf]
  %v159 = vld [vmem:[%s1 + $0xf8] sm:$0xf]
  %v160 = vld [vmem:[%s1 + $0xfc] sm:$0xf]
  %v161 = vld [vmem:[%s3] sm:$0xf]
  %v162 = vld [vmem:[%s3 + $0x4] sm:$0xf]
  %v163 = vld [vmem:[%s3 + $0x8] sm:$0xf]
  %v164 = vld [vmem:[%s3 + $0xc] sm:$0xf]
  %v229 = vunpack.c.l.b16 %v97
  %v230 = vunpack.c.l.b16 %v98
  %v231 = vunpack.c.l.b16 %v99
  %v232 = vunpack.c.l.b16 %v100
  %v233 = vunpack.c.l.b16 %v101
  %v234 = vunpack.c.l.b16 %v102
  %v235 = vunpack.c.l.b16 %v103
  %v236 = vunpack.c.l.b16 %v104
  %v237 = vunpack.c.l.b16 %v105
  %v238 = vunpack.c.l.b16 %v106
  %v239 = vunpack.c.l.b16 %v107
  %v240 = vunpack.c.l.b16 %v108
  %v241 = vunpack.c.l.b16 %v109
  %v242 = vunpack.c.l.b16 %v110
  %v243 = vunpack.c.l.b16 %v111
  %v244 = vunpack.c.l.b16 %v112
  %v245 = vunpack.c.l.b16 %v113
  %v246 = vunpack.c.l.b16 %v114
  %v247 = vunpack.c.l.b16 %v115
  %v248 = vunpack.c.l.b16 %v116
  %v249 = vunpack.c.l.b16 %v117
  %v250 = vunpack.c.l.b16 %v118
  %v251 = vunpack.c.l.b16 %v119
  %v252 = vunpack.c.l.b16 %v120
  %v253 = vunpack.c.l.b16 %v121
  %v254 = vunpack.c.l.b16 %v122
  %v255 = vunpack.c.l.b16 %v123
  %v256 = vunpack.c.l.b16 %v124
  %v257 = vunpack.c.l.b16 %v125
  %v258 = vunpack.c.l.b16 %v126
  %v259 = vunpack.c.l.b16 %v127
  %v260 = vunpack.c.l.b16 %v128
  %v261 = vunpack.c.l.b16 %v129
  %v262 = vunpack.c.l.b16 %v130
  %v263 = vunpack.c.l.b16 %v131
  %v264 = vunpack.c.l.b16 %v132
  %v265 = vunpack.c.l.b16 %v133
  %v266 = vunpack.c.l.b16 %v134
  %v267 = vunpack.c.l.b16 %v135
  %v268 = vunpack.c.l.b16 %v136
  %v269 = vunpack.c.l.b16 %v137
  %v270 = vunpack.c.l.b16 %v138
  %v271 = vunpack.c.l.b16 %v139
  %v272 = vunpack.c.l.b16 %v140
  %v273 = vunpack.c.l.b16 %v141
  %v274 = vunpack.c.l.b16 %v142
  %v275 = vunpack.c.l.b16 %v143
  %v276 = vunpack.c.l.b16 %v144
  %v277 = vunpack.c.l.b16 %v145
  %v278 = vunpack.c.l.b16 %v146
  %v279 = vunpack.c.l.b16 %v147
  %v280 = vunpack.c.l.b16 %v148
  %v281 = vunpack.c.l.b16 %v149
  %v282 = vunpack.c.l.b16 %v150
  %v283 = vunpack.c.l.b16 %v151
  %v284 = vunpack.c.l.b16 %v152
  %v285 = vunpack.c.l.b16 %v153
  %v286 = vunpack.c.l.b16 %v154
  %v287 = vunpack.c.l.b16 %v155
  %v288 = vunpack.c.l.b16 %v156
  %v289 = vunpack.c.l.b16 %v157
  %v290 = vunpack.c.l.b16 %v158
  %v291 = vunpack.c.l.b16 %v159
  %v292 = vunpack.c.l.b16 %v160
  %v293 = vpack.c.b16 %v230, %v229
  %v294 = vpack.c.b16 %v232, %v231
  %v295 = vpack.c.b16 %v234, %v233
  %v296 = vpack.c.b16 %v236, %v235
  %v297 = vpack.c.b16 %v238, %v237
  %v298 = vpack.c.b16 %v240, %v239
  %v299 = vpack.c.b16 %v242, %v241
  %v300 = vpack.c.b16 %v244, %v243
  %v301 = vpack.c.b16 %v246, %v245
  %v302 = vpack.c.b16 %v248, %v247
  %v303 = vpack.c.b16 %v250, %v249
  %v304 = vpack.c.b16 %v252, %v251
  %v305 = vpack.c.b16 %v254, %v253
  %v306 = vpack.c.b16 %v256, %v255
  %v307 = vpack.c.b16 %v258, %v257
  %v308 = vpack.c.b16 %v260, %v259
  %v309 = vpack.c.b16 %v262, %v261
  %v310 = vpack.c.b16 %v264, %v263
  %v311 = vpack.c.b16 %v266, %v265
  %v312 = vpack.c.b16 %v268, %v267
  %v313 = vpack.c.b16 %v270, %v269
  %v314 = vpack.c.b16 %v272, %v271
  %v315 = vpack.c.b16 %v274, %v273
  %v316 = vpack.c.b16 %v276, %v275
  %v317 = vpack.c.b16 %v278, %v277
  %v318 = vpack.c.b16 %v280, %v279
  %v319 = vpack.c.b16 %v282, %v281
  %v320 = vpack.c.b16 %v284, %v283
  %v321 = vpack.c.b16 %v286, %v285
  %v322 = vpack.c.b16 %v288, %v287
  %v323 = vpack.c.b16 %v290, %v289
  %v324 = vpack.c.b16 %v292, %v291
  %v329 = vunpack.c.l.b16 %v161
  %v330 = vunpack.c.l.b16 %v162
  %v331 = vunpack.c.l.b16 %v163
  %v332 = vunpack.c.l.b16 %v164
  %v333 = vpack.c.b16 %v330, %v329
  %v334 = vpack.c.b16 %v332, %v331
  %vm337 = vcmask 261120
  %v339 = vsel %vm337, %v293, 0
  %v342 = vsel %vm337, %v294, 0
  %v345 = vsel %vm337, %v295, 0
  %v348 = vsel %vm337, %v296, 0
  %v351 = vsel %vm337, %v297, 0
  %v354 = vsel %vm337, %v298, 0
  %v357 = vsel %vm337, %v299, 0
  %v360 = vsel %vm337, %v300, 0
  %v363 = vsel %vm337, %v301, 0
  %v366 = vsel %vm337, %v302, 0
  %v369 = vsel %vm337, %v303, 0
  %v372 = vsel %vm337, %v304, 0
  %v375 = vsel %vm337, %v305, 0
  %v378 = vsel %vm337, %v306, 0
  %v381 = vsel %vm337, %v307, 0
  %v384 = vsel %vm337, %v308, 0
  %v387 = vsel %vm337, %v309, 0
  %v390 = vsel %vm337, %v310, 0
  %v393 = vsel %vm337, %v311, 0
  %v396 = vsel %vm337, %v312, 0
  %v399 = vsel %vm337, %v313, 0
  %v402 = vsel %vm337, %v314, 0
  %v405 = vsel %vm337, %v315, 0
  %v408 = vsel %vm337, %v316, 0
  %v411 = vsel %vm337, %v317, 0
  %v414 = vsel %vm337, %v318, 0
  %v417 = vsel %vm337, %v319, 0
  %v420 = vsel %vm337, %v320, 0
  %v423 = vsel %vm337, %v321, 0
  %v426 = vsel %vm337, %v322, 0
  %v429 = vsel %vm337, %v323, 0
  %v432 = vsel %vm337, %v324, 0
  %434 = vmatprep.subr.bf16.mxu0 0
  %435 = vmatpush1.bf16.msra.mxu0 %v333
  %436 = vmatprep.subr.bf16.mxu0 0
  %437 = vmatpush1.bf16.msra.mxu0 %v334
  %438 = vmatprep.subr.bf16.mxu0 0
  %439 = vmatpush1.bf16.msra.mxu0 0
  %440 = vmatprep.subr.bf16.mxu0 0
  %441 = vmatpush1.bf16.msra.mxu0 0
  %442 = vmatprep.subr.bf16.mxu0 0
  %443 = vmatpush1.bf16.msra.mxu0 0
  %444 = vmatprep.subr.bf16.mxu0 0
  %445 = vmatpush1.bf16.msra.mxu0 0
  %446 = vmatprep.subr.bf16.mxu0 0
  %447 = vmatpush1.bf16.msra.mxu0 0
  %448 = vmatprep.subr.bf16.mxu0 0
  %449 = vmatpush1.bf16.msra.mxu0 0
  %450 = vmatprep.subr.bf16.mxu0 0
  %451 = vmatpush1.bf16.msra.mxu0 0
  %452 = vmatprep.subr.bf16.mxu0 0
  %453 = vmatpush1.bf16.msra.mxu0 0
  %454 = vmatprep.subr.bf16.mxu0 0
  %455 = vmatpush1.bf16.msra.mxu0 0
  %456 = vmatprep.subr.bf16.mxu0 0
  %457 = vmatpush1.bf16.msra.mxu0 0
  %458 = vmatprep.subr.bf16.mxu0 0
  %459 = vmatpush1.bf16.msra.mxu0 0
  %460 = vmatprep.subr.bf16.mxu0 0
  %461 = vmatpush1.bf16.msra.mxu0 0
  %462 = vmatprep.subr.bf16.mxu0 0
  %463 = vmatpush1.bf16.msra.mxu0 0
  %464 = vmatprep.subr.bf16.mxu0 0
  %465 = vmatpush1.bf16.msra.mxu0 0
  %466 = vmatprep.mubr.bf16.mxu0 0
  %467 = vmatmul.mubr.bf16.gmra.mrb[0].mxu0 %v339
  %v468 = vpop.f32.mrb[0].mxu0
  %v469 = vadd.f32 0.0, %v468
  %v470 = vpop.f32.mrb[0].mxu0
  %v471 = vpop.f32.mrb[0].mxu0
  %v472 = vadd.f32 0.0, %v471
  %v473 = vpop.f32.mrb[0].mxu0
  %474 = vmatprep.mubr.bf16.mxu0 0
  %475 = vmatmul.mubr.bf16.gmra.mrb[0].mxu0 %v342
  %v476 = vpop.f32.mrb[0].mxu0
  %v477 = vadd.f32 0.0, %v476
  %v478 = vpop.f32.mrb[0].mxu0
  %v479 = vpop.f32.mrb[0].mxu0
  %v480 = vadd.f32 0.0, %v479
  %v481 = vpop.f32.mrb[0].mxu0
  %482 = vmatprep.mubr.bf16.mxu0 0
  %483 = vmatmul.mubr.bf16.gmra.mrb[0].mxu0 %v345
  %v484 = vpop.f32.mrb[0].mxu0
  %v485 = vadd.f32 0.0, %v484
  %v486 = vpop.f32.mrb[0].mxu0
  %v487 = vpop.f32.mrb[0].mxu0
  %v488 = vadd.f32 0.0, %v487
  %v489 = vpop.f32.mrb[0].mxu0
  %490 = vmatprep.mubr.bf16.mxu0 0
  %491 = vmatmul.mubr.bf16.gmra.mrb[0].mxu0 %v348
  %v492 = vpop.f32.mrb[0].mxu0
  %v493 = vadd.f32 0.0, %v492
  %v494 = vpop.f32.mrb[0].mxu0
  %v495 = vpop.f32.mrb[0].mxu0
  %v496 = vadd.f32 0.0, %v495
  %v497 = vpop.f32.mrb[0].mxu0
  %498 = vmatprep.mubr.bf16.mxu0 0
  %499 = vmatmul.mubr.bf16.gmra.mrb[0].mxu0 %v351
  %v500 = vpop.f32.mrb[0].mxu0
  %v501 = vadd.f32 0.0, %v500
  %v502 = vpop.f32.mrb[0].mxu0
  %v503 = vpop.f32.mrb[0].mxu0
  %v504 = vadd.f32 0.0, %v503
  %v505 = vpop.f32.mrb[0].mxu0
  %506 = vmatprep.mubr.bf16.mxu0 0
  %507 = vmatmul.mubr.bf16.gmra.mrb[0].mxu0 %v354
  %v508 = vpop.f32.mrb[0].mxu0
  %v509 = vadd.f32 0.0, %v508
  %v510 = vpop.f32.mrb[0].mxu0
  %v511 = vpop.f32.mrb[0].mxu0
  %v512 = vadd.f32 0.0, %v511
  %v513 = vpop.f32.mrb[0].mxu0
  %514 = vmatprep.mubr.bf16.mxu0 0
  %515 = vmatmul.mubr.bf16.gmra.mrb[0].mxu0 %v357
  %v516 = vpop.f32.mrb[0].mxu0
  %v517 = vadd.f32 0.0, %v516
  %v518 = vpop.f32.mrb[0].mxu0
  %v519 = vpop.f32.mrb[0].mxu0
  %v520 = vadd.f32 0.0, %v519
  %v521 = vpop.f32.mrb[0].mxu0
  %522 = vmatprep.mubr.bf16.mxu0 0
  %523 = vmatmul.mubr.bf16.gmra.mrb[0].mxu0 %v360
  %v524 = vpop.f32.mrb[0].mxu0
  %v525 = vadd.f32 0.0, %v524
  %v526 = vpop.f32.mrb[0].mxu0
  %v527 = vpop.f32.mrb[0].mxu0
  %v528 = vadd.f32 0.0, %v527
  %v529 = vpop.f32.mrb[0].mxu0
  %530 = vmatprep.mubr.bf16.mxu0 0
  %531 = vmatmul.mubr.bf16.gmra.mrb[0].mxu0 %v363
  %v532 = vpop.f32.mrb[0].mxu0
  %v533 = vadd.f32 0.0, %v532
  %v534 = vpop.f32.mrb[0].mxu0
  %v535 = vpop.f32.mrb[0].mxu0
  %v536 = vadd.f32 0.0, %v535
  %v537 = vpop.f32.mrb[0].mxu0
  %538 = vmatprep.mubr.bf16.mxu0 0
  %539 = vmatmul.mubr.bf16.gmra.mrb[0].mxu0 %v366
  %v540 = vpop.f32.mrb[0].mxu0
  %v541 = vadd.f32 0.0, %v540
  %v542 = vpop.f32.mrb[0].mxu0
  %v543 = vpop.f32.mrb[0].mxu0
  %v544 = vadd.f32 0.0, %v543
  %v545 = vpop.f32.mrb[0].mxu0
  %546 = vmatprep.mubr.bf16.mxu0 0
  %547 = vmatmul.mubr.bf16.gmra.mrb[0].mxu0 %v369
  %v548 = vpop.f32.mrb[0].mxu0
  %v549 = vadd.f32 0.0, %v548
  %v550 = vpop.f32.mrb[0].mxu0
  %v551 = vpop.f32.mrb[0].mxu0
  %v552 = vadd.f32 0.0, %v551
  %v553 = vpop.f32.mrb[0].mxu0
  %554 = vmatprep.mubr.bf16.mxu0 0
  %555 = vmatmul.mubr.bf16.gmra.mrb[0].mxu0 %v372
  %v556 = vpop.f32.mrb[0].mxu0
  %v557 = vadd.f32 0.0, %v556
  %v558 = vpop.f32.mrb[0].mxu0
  %v559 = vpop.f32.mrb[0].mxu0
  %v560 = vadd.f32 0.0, %v559
  %v561 = vpop.f32.mrb[0].mxu0
  %562 = vmatprep.mubr.bf16.mxu0 0
  %563 = vmatmul.mubr.bf16.gmra.mrb[0].mxu0 %v375
  %v564 = vpop.f32.mrb[0].mxu0
  %v565 = vadd.f32 0.0, %v564
  %v566 = vpop.f32.mrb[0].mxu0
  %v567 = vpop.f32.mrb[0].mxu0
  %v568 = vadd.f32 0.0, %v567
  %v569 = vpop.f32.mrb[0].mxu0
  %570 = vmatprep.mubr.bf16.mxu0 0
  %571 = vmatmul.mubr.bf16.gmra.mrb[0].mxu0 %v378
  %v572 = vpop.f32.mrb[0].mxu0
  %v573 = vadd.f32 0.0, %v572
  %v574 = vpop.f32.mrb[0].mxu0
  %v575 = vpop.f32.mrb[0].mxu0
  %v576 = vadd.f32 0.0, %v575
  %v577 = vpop.f32.mrb[0].mxu0
  %578 = vmatprep.mubr.bf16.mxu0 0
  %579 = vmatmul.mubr.bf16.gmra.mrb[0].mxu0 %v381
  %v580 = vpop.f32.mrb[0].mxu0
  %v581 = vadd.f32 0.0, %v580
  %v582 = vpop.f32.mrb[0].mxu0
  %v583 = vpop.f32.mrb[0].mxu0
  %v584 = vadd.f32 0.0, %v583
  %v585 = vpop.f32.mrb[0].mxu0
  %586 = vmatprep.mubr.bf16.mxu0 0
  %587 = vmatmul.mubr.bf16.gmra.mrb[0].mxu0 %v384
  %v588 = vpop.f32.mrb[0].mxu0
  %v589 = vadd.f32 0.0, %v588
  %v590 = vpop.f32.mrb[0].mxu0
  %v591 = vpop.f32.mrb[0].mxu0
  %v592 = vadd.f32 0.0, %v591
  %v593 = vpop.f32.mrb[0].mxu0
  %594 = vmatprep.mubr.bf16.mxu0 0
  %595 = vmatmul.mubr.bf16.gmra.mrb[0].mxu0 %v387
  %v596 = vpop.f32.mrb[0].mxu0
  %v597 = vadd.f32 0.0, %v596
  %v598 = vpop.f32.mrb[0].mxu0
  %v599 = vpop.f32.mrb[0].mxu0
  %v600 = vadd.f32 0.0, %v599
  %v601 = vpop.f32.mrb[0].mxu0
  %602 = vmatprep.mubr.bf16.mxu0 0
  %603 = vmatmul.mubr.bf16.gmra.mrb[0].mxu0 %v390
  %v604 = vpop.f32.mrb[0].mxu0
  %v605 = vadd.f32 0.0, %v604
  %v606 = vpop.f32.mrb[0].mxu0
  %v607 = vpop.f32.mrb[0].mxu0
  %v608 = vadd.f32 0.0, %v607
  %v609 = vpop.f32.mrb[0].mxu0
  %610 = vmatprep.mubr.bf16.mxu0 0
  %611 = vmatmul.mubr.bf16.gmra.mrb[0].mxu0 %v393
  %v612 = vpop.f32.mrb[0].mxu0
  %v613 = vadd.f32 0.0, %v612
  %v614 = vpop.f32.mrb[0].mxu0
  %v615 = vpop.f32.mrb[0].mxu0
  %v616 = vadd.f32 0.0, %v615
  %v617 = vpop.f32.mrb[0].mxu0
  %618 = vmatprep.mubr.bf16.mxu0 0
  %619 = vmatmul.mubr.bf16.gmra.mrb[0].mxu0 %v396
  %v620 = vpop.f32.mrb[0].mxu0
  %v621 = vadd.f32 0.0, %v620
  %v622 = vpop.f32.mrb[0].mxu0
  %v623 = vpop.f32.mrb[0].mxu0
  %v624 = vadd.f32 0.0, %v623
  %v625 = vpop.f32.mrb[0].mxu0
  %626 = vmatprep.mubr.bf16.mxu0 0
  %627 = vmatmul.mubr.bf16.gmra.mrb[0].mxu0 %v399
  %v628 = vpop.f32.mrb[0].mxu0
  %v629 = vadd.f32 0.0, %v628
  %v630 = vpop.f32.mrb[0].mxu0
  %v631 = vpop.f32.mrb[0].mxu0
  %v632 = vadd.f32 0.0, %v631
  %v633 = vpop.f32.mrb[0].mxu0
  %634 = vmatprep.mubr.bf16.mxu0 0
  %635 = vmatmul.mubr.bf16.gmra.mrb[0].mxu0 %v402
  %v636 = vpop.f32.mrb[0].mxu0
  %v637 = vadd.f32 0.0, %v636
  %v638 = vpop.f32.mrb[0].mxu0
  %v639 = vpop.f32.mrb[0].mxu0
  %v640 = vadd.f32 0.0, %v639
  %v641 = vpop.f32.mrb[0].mxu0
  %642 = vmatprep.mubr.bf16.mxu0 0
  %643 = vmatmul.mubr.bf16.gmra.mrb[0].mxu0 %v405
  %v644 = vpop.f32.mrb[0].mxu0
  %v645 = vadd.f32 0.0, %v644
  %v646 = vpop.f32.mrb[0].mxu0
  %v647 = vpop.f32.mrb[0].mxu0
  %v648 = vadd.f32 0.0, %v647
  %v649 = vpop.f32.mrb[0].mxu0
  %650 = vmatprep.mubr.bf16.mxu0 0
  %651 = vmatmul.mubr.bf16.gmra.mrb[0].mxu0 %v408
  %v652 = vpop.f32.mrb[0].mxu0
  %v653 = vadd.f32 0.0, %v652
  %v654 = vpop.f32.mrb[0].mxu0
  %v655 = vpop.f32.mrb[0].mxu0
  %v656 = vadd.f32 0.0, %v655
  %v657 = vpop.f32.mrb[0].mxu0
  %658 = vmatprep.mubr.bf16.mxu0 0
  %659 = vmatmul.mubr.bf16.gmra.mrb[0].mxu0 %v411
  %v660 = vpop.f32.mrb[0].mxu0
  %v661 = vadd.f32 0.0, %v660
  %v662 = vpop.f32.mrb[0].mxu0
  %v663 = vpop.f32.mrb[0].mxu0
  %v664 = vadd.f32 0.0, %v663
  %v665 = vpop.f32.mrb[0].mxu0
  %666 = vmatprep.mubr.bf16.mxu0 0
  %667 = vmatmul.mubr.bf16.gmra.mrb[0].mxu0 %v414
  %v668 = vpop.f32.mrb[0].mxu0
  %v669 = vadd.f32 0.0, %v668
  %v670 = vpop.f32.mrb[0].mxu0
  %v671 = vpop.f32.mrb[0].mxu0
  %v672 = vadd.f32 0.0, %v671
  %v673 = vpop.f32.mrb[0].mxu0
  %674 = vmatprep.mubr.bf16.mxu0 0
  %675 = vmatmul.mubr.bf16.gmra.mrb[0].mxu0 %v417
  %v676 = vpop.f32.mrb[0].mxu0
  %v677 = vadd.f32 0.0, %v676
  %v678 = vpop.f32.mrb[0].mxu0
  %v679 = vpop.f32.mrb[0].mxu0
  %v680 = vadd.f32 0.0, %v679
  %v681 = vpop.f32.mrb[0].mxu0
  %682 = vmatprep.mubr.bf16.mxu0 0
  %683 = vmatmul.mubr.bf16.gmra.mrb[0].mxu0 %v420
  %v684 = vpop.f32.mrb[0].mxu0
  %v685 = vadd.f32 0.0, %v684
  %v686 = vpop.f32.mrb[0].mxu0
  %v687 = vpop.f32.mrb[0].mxu0
  %v688 = vadd.f32 0.0, %v687
  %v689 = vpop.f32.mrb[0].mxu0
  %690 = vmatprep.mubr.bf16.mxu0 0
  %691 = vmatmul.mubr.bf16.gmra.mrb[0].mxu0 %v423
  %v692 = vpop.f32.mrb[0].mxu0
  %v693 = vadd.f32 0.0, %v692
  %v694 = vpop.f32.mrb[0].mxu0
  %v695 = vpop.f32.mrb[0].mxu0
  %v696 = vadd.f32 0.0, %v695
  %v697 = vpop.f32.mrb[0].mxu0
  %698 = vmatprep.mubr.bf16.mxu0 0
  %699 = vmatmul.mubr.bf16.gmra.mrb[0].mxu0 %v426
  %v700 = vpop.f32.mrb[0].mxu0
  %v701 = vadd.f32 0.0, %v700
  %v702 = vpop.f32.mrb[0].mxu0
  %v703 = vpop.f32.mrb[0].mxu0
  %v704 = vadd.f32 0.0, %v703
  %v705 = vpop.f32.mrb[0].mxu0
  %706 = vmatprep.mubr.bf16.mxu0 0
  %707 = vmatmul.mubr.bf16.gmra.mrb[0].mxu0 %v429
  %v708 = vpop.f32.mrb[0].mxu0
  %v709 = vadd.f32 0.0, %v708
  %v710 = vpop.f32.mrb[0].mxu0
  %v711 = vpop.f32.mrb[0].mxu0
  %v712 = vadd.f32 0.0, %v711
  %v713 = vpop.f32.mrb[0].mxu0
  %714 = vmatprep.mubr.bf16.mxu0 0
  %715 = vmatmul.mubr.bf16.gmra.mrb[0].mxu0 %v432
  %v716 = vpop.f32.mrb[0].mxu0
  %v717 = vadd.f32 0.0, %v716
  %v718 = vpop.f32.mrb[0].mxu0
  %v719 = vpop.f32.mrb[0].mxu0
  %v720 = vadd.f32 0.0, %v719
  %v721 = vpop.f32.mrb[0].mxu0
  %722 = vdwg.mxu0
  %v787 = vunpack.c.l.b16 %v29
  %v788 = vunpack.c.l.b16 %v30
  %v789 = vunpack.c.l.b16 %v31
  %v790 = vunpack.c.l.b16 %v32
  %v791 = vunpack.c.l.b16 %v33
  %v792 = vunpack.c.l.b16 %v34
  %v793 = vunpack.c.l.b16 %v35
  %v794 = vunpack.c.l.b16 %v36
  %v795 = vunpack.c.l.b16 %v37
  %v796 = vunpack.c.l.b16 %v38
  %v797 = vunpack.c.l.b16 %v39
  %v798 = vunpack.c.l.b16 %v40
  %v799 = vunpack.c.l.b16 %v41
  %v800 = vunpack.c.l.b16 %v42
  %v801 = vunpack.c.l.b16 %v43
  %v802 = vunpack.c.l.b16 %v44
  %v803 = vunpack.c.l.b16 %v45
  %v804 = vunpack.c.l.b16 %v46
  %v805 = vunpack.c.l.b16 %v47
  %v806 = vunpack.c.l.b16 %v48
  %v807 = vunpack.c.l.b16 %v49
  %v808 = vunpack.c.l.b16 %v50
  %v809 = vunpack.c.l.b16 %v51
  %v810 = vunpack.c.l.b16 %v52
  %v811 = vunpack.c.l.b16 %v53
  %v812 = vunpack.c.l.b16 %v54
  %v813 = vunpack.c.l.b16 %v55
  %v814 = vunpack.c.l.b16 %v56
  %v815 = vunpack.c.l.b16 %v57
  %v816 = vunpack.c.l.b16 %v58
  %v817 = vunpack.c.l.b16 %v59
  %v818 = vunpack.c.l.b16 %v60
  %v819 = vunpack.c.l.b16 %v61
  %v820 = vunpack.c.l.b16 %v62
  %v821 = vunpack.c.l.b16 %v63
  %v822 = vunpack.c.l.b16 %v64
  %v823 = vunpack.c.l.b16 %v65
  %v824 = vunpack.c.l.b16 %v66
  %v825 = vunpack.c.l.b16 %v67
  %v826 = vunpack.c.l.b16 %v68
  %v827 = vunpack.c.l.b16 %v69
  %v828 = vunpack.c.l.b16 %v70
  %v829 = vunpack.c.l.b16 %v71
  %v830 = vunpack.c.l.b16 %v72
  %v831 = vunpack.c.l.b16 %v73
  %v832 = vunpack.c.l.b16 %v74
  %v833 = vunpack.c.l.b16 %v75
  %v834 = vunpack.c.l.b16 %v76
  %v835 = vunpack.c.l.b16 %v77
  %v836 = vunpack.c.l.b16 %v78
  %v837 = vunpack.c.l.b16 %v79
  %v838 = vunpack.c.l.b16 %v80
  %v839 = vunpack.c.l.b16 %v81
  %v840 = vunpack.c.l.b16 %v82
  %v841 = vunpack.c.l.b16 %v83
  %v842 = vunpack.c.l.b16 %v84
  %v843 = vunpack.c.l.b16 %v85
  %v844 = vunpack.c.l.b16 %v86
  %v845 = vunpack.c.l.b16 %v87
  %v846 = vunpack.c.l.b16 %v88
  %v847 = vunpack.c.l.b16 %v89
  %v848 = vunpack.c.l.b16 %v90
  %v849 = vunpack.c.l.b16 %v91
  %v850 = vunpack.c.l.b16 %v92
  %v851 = vpack.c.b16 %v788, %v787
  %v852 = vpack.c.b16 %v790, %v789
  %v853 = vpack.c.b16 %v792, %v791
  %v854 = vpack.c.b16 %v794, %v793
  %v855 = vpack.c.b16 %v796, %v795
  %v856 = vpack.c.b16 %v798, %v797
  %v857 = vpack.c.b16 %v800, %v799
  %v858 = vpack.c.b16 %v802, %v801
  %v859 = vpack.c.b16 %v804, %v803
  %v860 = vpack.c.b16 %v806, %v805
  %v861 = vpack.c.b16 %v808, %v807
  %v862 = vpack.c.b16 %v810, %v809
  %v863 = vpack.c.b16 %v812, %v811
  %v864 = vpack.c.b16 %v814, %v813
  %v865 = vpack.c.b16 %v816, %v815
  %v866 = vpack.c.b16 %v818, %v817
  %v867 = vpack.c.b16 %v820, %v819
  %v868 = vpack.c.b16 %v822, %v821
  %v869 = vpack.c.b16 %v824, %v823
  %v870 = vpack.c.b16 %v826, %v825
  %v871 = vpack.c.b16 %v828, %v827
  %v872 = vpack.c.b16 %v830, %v829
  %v873 = vpack.c.b16 %v832, %v831
  %v874 = vpack.c.b16 %v834, %v833
  %v875 = vpack.c.b16 %v836, %v835
  %v876 = vpack.c.b16 %v838, %v837
  %v877 = vpack.c.b16 %v840, %v839
  %v878 = vpack.c.b16 %v842, %v841
  %v879 = vpack.c.b16 %v844, %v843
  %v880 = vpack.c.b16 %v846, %v845
  %v881 = vpack.c.b16 %v848, %v847
  %v882 = vpack.c.b16 %v850, %v849
  %v887 = vunpack.c.l.b16 %v93
  %v888 = vunpack.c.l.b16 %v94
  %v889 = vunpack.c.l.b16 %v95
  %v890 = vunpack.c.l.b16 %v96
  %v891 = vpack.c.b16 %v888, %v887
  %v892 = vpack.c.b16 %v890, %v889
  %v896 = vsel %vm337, %v851, 0
  %v899 = vsel %vm337, %v852, 0
  %v902 = vsel %vm337, %v853, 0
  %v905 = vsel %vm337, %v854, 0
  %v908 = vsel %vm337, %v855, 0
  %v911 = vsel %vm337, %v856, 0
  %v914 = vsel %vm337, %v857, 0
  %v917 = vsel %vm337, %v858, 0
  %v920 = vsel %vm337, %v859, 0
  %v923 = vsel %vm337, %v860, 0
  %v926 = vsel %vm337, %v861, 0
  %v929 = vsel %vm337, %v862, 0
  %v932 = vsel %vm337, %v863, 0
  %v935 = vsel %vm337, %v864, 0
  %v938 = vsel %vm337, %v865, 0
  %v941 = vsel %vm337, %v866, 0
  %v944 = vsel %vm337, %v867, 0
  %v947 = vsel %vm337, %v868, 0
  %v950 = vsel %vm337, %v869, 0
  %v953 = vsel %vm337, %v870, 0
  %v956 = vsel %vm337, %v871, 0
  %v959 = vsel %vm337, %v872, 0
  %v962 = vsel %vm337, %v873, 0
  %v965 = vsel %vm337, %v874, 0
  %v968 = vsel %vm337, %v875, 0
  %v971 = vsel %vm337, %v876, 0
  %v974 = vsel %vm337, %v877, 0
  %v977 = vsel %vm337, %v878, 0
  %v980 = vsel %vm337, %v879, 0
  %v983 = vsel %vm337, %v880, 0
  %v986 = vsel %vm337, %v881, 0
  %v989 = vsel %vm337, %v882, 0
  %991 = vmatprep.subr.bf16.mxu0 0
  %992 = vmatpush1.bf16.msra.mxu0 %v891
  %993 = vmatprep.subr.bf16.mxu0 0
  %994 = vmatpush1.bf16.msra.mxu0 %v892
  %995 = vmatprep.subr.bf16.mxu0 0
  %996 = vmatpush1.bf16.msra.mxu0 0
  %997 = vmatprep.subr.bf16.mxu0 0
  %998 = vmatpush1.bf16.msra.mxu0 0
  %999 = vmatprep.subr.bf16.mxu0 0
  %1000 = vmatpush1.bf16.msra.mxu0 0
  %1001 = vmatprep.subr.bf16.mxu0 0
  %1002 = vmatpush1.bf16.msra.mxu0 0
  %1003 = vmatprep.subr.bf16.mxu0 0
  %1004 = vmatpush1.bf16.msra.mxu0 0
  %1005 = vmatprep.subr.bf16.mxu0 0
  %1006 = vmatpush1.bf16.msra.mxu0 0
  %1007 = vmatprep.subr.bf16.mxu0 0
  %1008 = vmatpush1.bf16.msra.mxu0 0
  %1009 = vmatprep.subr.bf16.mxu0 0
  %1010 = vmatpush1.bf16.msra.mxu0 0
  %1011 = vmatprep.subr.bf16.mxu0 0
  %1012 = vmatpush1.bf16.msra.mxu0 0
  %1013 = vmatprep.subr.bf16.mxu0 0
  %1014 = vmatpush1.bf16.msra.mxu0 0
  %1015 = vmatprep.subr.bf16.mxu0 0
  %1016 = vmatpush1.bf16.msra.mxu0 0
  %1017 = vmatprep.subr.bf16.mxu0 0
  %1018 = vmatpush1.bf16.msra.mxu0 0
  %1019 = vmatprep.subr.bf16.mxu0 0
  %1020 = vmatpush1.bf16.msra.mxu0 0
  %1021 = vmatprep.subr.bf16.mxu0 0
  %1022 = vmatpush1.bf16.msra.mxu0 0
  %1023 = vmatprep.mubr.bf16.mxu0 0
  %1024 = vmatmul.mubr.bf16.gmra.mrb[0].mxu0 %v896
  %v1025 = vpop.f32.mrb[0].mxu0
  %v1026 = vadd.f32 %v469, %v1025
  %v1027 = vpop.f32.mrb[0].mxu0
  %v1028 = vpop.f32.mrb[0].mxu0
  %v1029 = vadd.f32 %v472, %v1028
  %v1030 = vpop.f32.mrb[0].mxu0
  %1031 = vmatprep.mubr.bf16.mxu0 0
  %1032 = vmatmul.mubr.bf16.gmra.mrb[0].mxu0 %v899
  %v1033 = vpop.f32.mrb[0].mxu0
  %v1034 = vadd.f32 %v477, %v1033
  %v1035 = vpop.f32.mrb[0].mxu0
  %v1036 = vpop.f32.mrb[0].mxu0
  %v1037 = vadd.f32 %v480, %v1036
  %v1038 = vpop.f32.mrb[0].mxu0
  %1039 = vmatprep.mubr.bf16.mxu0 0
  %1040 = vmatmul.mubr.bf16.gmra.mrb[0].mxu0 %v902
  %v1041 = vpop.f32.mrb[0].mxu0
  %v1042 = vadd.f32 %v485, %v1041
  %v1043 = vpop.f32.mrb[0].mxu0
  %v1044 = vpop.f32.mrb[0].mxu0
  %v1045 = vadd.f32 %v488, %v1044
  %v1046 = vpop.f32.mrb[0].mxu0
  %1047 = vmatprep.mubr.bf16.mxu0 0
  %1048 = vmatmul.mubr.bf16.gmra.mrb[0].mxu0 %v905
  %v1049 = vpop.f32.mrb[0].mxu0
  %v1050 = vadd.f32 %v493, %v1049
  %v1051 = vpop.f32.mrb[0].mxu0
  %v1052 = vpop.f32.mrb[0].mxu0
  %v1053 = vadd.f32 %v496, %v1052
  %v1054 = vpop.f32.mrb[0].mxu0
  %1055 = vmatprep.mubr.bf16.mxu0 0
  %1056 = vmatmul.mubr.bf16.gmra.mrb[0].mxu0 %v908
  %v1057 = vpop.f32.mrb[0].mxu0
  %v1058 = vadd.f32 %v501, %v1057
  %v1059 = vpop.f32.mrb[0].mxu0
  %v1060 = vpop.f32.mrb[0].mxu0
  %v1061 = vadd.f32 %v504, %v1060
  %v1062 = vpop.f32.mrb[0].mxu0
  %1063 = vmatprep.mubr.bf16.mxu0 0
  %1064 = vmatmul.mubr.bf16.gmra.mrb[0].mxu0 %v911
  %v1065 = vpop.f32.mrb[0].mxu0
  %v1066 = vadd.f32 %v509, %v1065
  %v1067 = vpop.f32.mrb[0].mxu0
  %v1068 = vpop.f32.mrb[0].mxu0
  %v1069 = vadd.f32 %v512, %v1068
  %v1070 = vpop.f32.mrb[0].mxu0
  %1071 = vmatprep.mubr.bf16.mxu0 0
  %1072 = vmatmul.mubr.bf16.gmra.mrb[0].mxu0 %v914
  %v1073 = vpop.f32.mrb[0].mxu0
  %v1074 = vadd.f32 %v517, %v1073
  %v1075 = vpop.f32.mrb[0].mxu0
  %v1076 = vpop.f32.mrb[0].mxu0
  %v1077 = vadd.f32 %v520, %v1076
  %v1078 = vpop.f32.mrb[0].mxu0
  %1079 = vmatprep.mubr.bf16.mxu0 0
  %1080 = vmatmul.mubr.bf16.gmra.mrb[0].mxu0 %v917
  %v1081 = vpop.f32.mrb[0].mxu0
  %v1082 = vadd.f32 %v525, %v1081
  %v1083 = vpop.f32.mrb[0].mxu0
  %v1084 = vpop.f32.mrb[0].mxu0
  %v1085 = vadd.f32 %v528, %v1084
  %v1086 = vpop.f32.mrb[0].mxu0
  %1087 = vmatprep.mubr.bf16.mxu0 0
  %1088 = vmatmul.mubr.bf16.gmra.mrb[0].mxu0 %v920
  %v1089 = vpop.f32.mrb[0].mxu0
  %v1090 = vadd.f32 %v533, %v1089
  %v1091 = vpop.f32.mrb[0].mxu0
  %v1092 = vpop.f32.mrb[0].mxu0
  %v1093 = vadd.f32 %v536, %v1092
  %v1094 = vpop.f32.mrb[0].mxu0
  %1095 = vmatprep.mubr.bf16.mxu0 0
  %1096 = vmatmul.mubr.bf16.gmra.mrb[0].mxu0 %v923
  %v1097 = vpop.f32.mrb[0].mxu0
  %v1098 = vadd.f32 %v541, %v1097
  %v1099 = vpop.f32.mrb[0].mxu0
  %v1100 = vpop.f32.mrb[0].mxu0
  %v1101 = vadd.f32 %v544, %v1100
  %v1102 = vpop.f32.mrb[0].mxu0
  %1103 = vmatprep.mubr.bf16.mxu0 0
  %1104 = vmatmul.mubr.bf16.gmra.mrb[0].mxu0 %v926
  %v1105 = vpop.f32.mrb[0].mxu0
  %v1106 = vadd.f32 %v549, %v1105
  %v1107 = vpop.f32.mrb[0].mxu0
  %v1108 = vpop.f32.mrb[0].mxu0
  %v1109 = vadd.f32 %v552, %v1108
  %v1110 = vpop.f32.mrb[0].mxu0
  %1111 = vmatprep.mubr.bf16.mxu0 0
  %1112 = vmatmul.mubr.bf16.gmra.mrb[0].mxu0 %v929
  %v1113 = vpop.f32.mrb[0].mxu0
  %v1114 = vadd.f32 %v557, %v1113
  %v1115 = vpop.f32.mrb[0].mxu0
  %v1116 = vpop.f32.mrb[0].mxu0
  %v1117 = vadd.f32 %v560, %v1116
  %v1118 = vpop.f32.mrb[0].mxu0
  %1119 = vmatprep.mubr.bf16.mxu0 0
  %1120 = vmatmul.mubr.bf16.gmra.mrb[0].mxu0 %v932
  %v1121 = vpop.f32.mrb[0].mxu0
  %v1122 = vadd.f32 %v565, %v1121
  %v1123 = vpop.f32.mrb[0].mxu0
  %v1124 = vpop.f32.mrb[0].mxu0
  %v1125 = vadd.f32 %v568, %v1124
  %v1126 = vpop.f32.mrb[0].mxu0
  %1127 = vmatprep.mubr.bf16.mxu0 0
  %1128 = vmatmul.mubr.bf16.gmra.mrb[0].mxu0 %v935
  %v1129 = vpop.f32.mrb[0].mxu0
  %v1130 = vadd.f32 %v573, %v1129
  %v1131 = vpop.f32.mrb[0].mxu0
  %v1132 = vpop.f32.mrb[0].mxu0
  %v1133 = vadd.f32 %v576, %v1132
  %v1134 = vpop.f32.mrb[0].mxu0
  %1135 = vmatprep.mubr.bf16.mxu0 0
  %1136 = vmatmul.mubr.bf16.gmra.mrb[0].mxu0 %v938
  %v1137 = vpop.f32.mrb[0].mxu0
  %v1138 = vadd.f32 %v581, %v1137
  %v1139 = vpop.f32.mrb[0].mxu0
  %v1140 = vpop.f32.mrb[0].mxu0
  %v1141 = vadd.f32 %v584, %v1140
  %v1142 = vpop.f32.mrb[0].mxu0
  %1143 = vmatprep.mubr.bf16.mxu0 0
  %1144 = vmatmul.mubr.bf16.gmra.mrb[0].mxu0 %v941
  %v1145 = vpop.f32.mrb[0].mxu0
  %v1146 = vadd.f32 %v589, %v1145
  %v1147 = vpop.f32.mrb[0].mxu0
  %v1148 = vpop.f32.mrb[0].mxu0
  %v1149 = vadd.f32 %v592, %v1148
  %v1150 = vpop.f32.mrb[0].mxu0
  %1151 = vmatprep.mubr.bf16.mxu0 0
  %1152 = vmatmul.mubr.bf16.gmra.mrb[0].mxu0 %v944
  %v1153 = vpop.f32.mrb[0].mxu0
  %v1154 = vadd.f32 %v597, %v1153
  %v1155 = vpop.f32.mrb[0].mxu0
  %v1156 = vpop.f32.mrb[0].mxu0
  %v1157 = vadd.f32 %v600, %v1156
  %v1158 = vpop.f32.mrb[0].mxu0
  %1159 = vmatprep.mubr.bf16.mxu0 0
  %1160 = vmatmul.mubr.bf16.gmra.mrb[0].mxu0 %v947
  %v1161 = vpop.f32.mrb[0].mxu0
  %v1162 = vadd.f32 %v605, %v1161
  %v1163 = vpop.f32.mrb[0].mxu0
  %v1164 = vpop.f32.mrb[0].mxu0
  %v1165 = vadd.f32 %v608, %v1164
  %v1166 = vpop.f32.mrb[0].mxu0
  %1167 = vmatprep.mubr.bf16.mxu0 0
  %1168 = vmatmul.mubr.bf16.gmra.mrb[0].mxu0 %v950
  %v1169 = vpop.f32.mrb[0].mxu0
  %v1170 = vadd.f32 %v613, %v1169
  %v1171 = vpop.f32.mrb[0].mxu0
  %v1172 = vpop.f32.mrb[0].mxu0
  %v1173 = vadd.f32 %v616, %v1172
  %v1174 = vpop.f32.mrb[0].mxu0
  %1175 = vmatprep.mubr.bf16.mxu0 0
  %1176 = vmatmul.mubr.bf16.gmra.mrb[0].mxu0 %v953
  %v1177 = vpop.f32.mrb[0].mxu0
  %v1178 = vadd.f32 %v621, %v1177
  %v1179 = vpop.f32.mrb[0].mxu0
  %v1180 = vpop.f32.mrb[0].mxu0
  %v1181 = vadd.f32 %v624, %v1180
  %v1182 = vpop.f32.mrb[0].mxu0
  %1183 = vmatprep.mubr.bf16.mxu0 0
  %1184 = vmatmul.mubr.bf16.gmra.mrb[0].mxu0 %v956
  %v1185 = vpop.f32.mrb[0].mxu0
  %v1186 = vadd.f32 %v629, %v1185
  %v1187 = vpop.f32.mrb[0].mxu0
  %v1188 = vpop.f32.mrb[0].mxu0
  %v1189 = vadd.f32 %v632, %v1188
  %v1190 = vpop.f32.mrb[0].mxu0
  %1191 = vmatprep.mubr.bf16.mxu0 0
  %1192 = vmatmul.mubr.bf16.gmra.mrb[0].mxu0 %v959
  %v1193 = vpop.f32.mrb[0].mxu0
  %v1194 = vadd.f32 %v637, %v1193
  %v1195 = vpop.f32.mrb[0].mxu0
  %v1196 = vpop.f32.mrb[0].mxu0
  %v1197 = vadd.f32 %v640, %v1196
  %v1198 = vpop.f32.mrb[0].mxu0
  %1199 = vmatprep.mubr.bf16.mxu0 0
  %1200 = vmatmul.mubr.bf16.gmra.mrb[0].mxu0 %v962
  %v1201 = vpop.f32.mrb[0].mxu0
  %v1202 = vadd.f32 %v645, %v1201
  %v1203 = vpop.f32.mrb[0].mxu0
  %v1204 = vpop.f32.mrb[0].mxu0
  %v1205 = vadd.f32 %v648, %v1204
  %v1206 = vpop.f32.mrb[0].mxu0
  %1207 = vmatprep.mubr.bf16.mxu0 0
  %1208 = vmatmul.mubr.bf16.gmra.mrb[0].mxu0 %v965
  %v1209 = vpop.f32.mrb[0].mxu0
  %v1210 = vadd.f32 %v653, %v1209
  %v1211 = vpop.f32.mrb[0].mxu0
  %v1212 = vpop.f32.mrb[0].mxu0
  %v1213 = vadd.f32 %v656, %v1212
  %v1214 = vpop.f32.mrb[0].mxu0
  %1215 = vmatprep.mubr.bf16.mxu0 0
  %1216 = vmatmul.mubr.bf16.gmra.mrb[0].mxu0 %v968
  %v1217 = vpop.f32.mrb[0].mxu0
  %v1218 = vadd.f32 %v661, %v1217
  %v1219 = vpop.f32.mrb[0].mxu0
  %v1220 = vpop.f32.mrb[0].mxu0
  %v1221 = vadd.f32 %v664, %v1220
  %v1222 = vpop.f32.mrb[0].mxu0
  %1223 = vmatprep.mubr.bf16.mxu0 0
  %1224 = vmatmul.mubr.bf16.gmra.mrb[0].mxu0 %v971
  %v1225 = vpop.f32.mrb[0].mxu0
  %v1226 = vadd.f32 %v669, %v1225
  %v1227 = vpop.f32.mrb[0].mxu0
  %v1228 = vpop.f32.mrb[0].mxu0
  %v1229 = vadd.f32 %v672, %v1228
  %v1230 = vpop.f32.mrb[0].mxu0
  %1231 = vmatprep.mubr.bf16.mxu0 0
  %1232 = vmatmul.mubr.bf16.gmra.mrb[0].mxu0 %v974
  %v1233 = vpop.f32.mrb[0].mxu0
  %v1234 = vadd.f32 %v677, %v1233
  %v1235 = vpop.f32.mrb[0].mxu0
  %v1236 = vpop.f32.mrb[0].mxu0
  %v1237 = vadd.f32 %v680, %v1236
  %v1238 = vpop.f32.mrb[0].mxu0
  %1239 = vmatprep.mubr.bf16.mxu0 0
  %1240 = vmatmul.mubr.bf16.gmra.mrb[0].mxu0 %v977
  %v1241 = vpop.f32.mrb[0].mxu0
  %v1242 = vadd.f32 %v685, %v1241
  %v1243 = vpop.f32.mrb[0].mxu0
  %v1244 = vpop.f32.mrb[0].mxu0
  %v1245 = vadd.f32 %v688, %v1244
  %v1246 = vpop.f32.mrb[0].mxu0
  %1247 = vmatprep.mubr.bf16.mxu0 0
  %1248 = vmatmul.mubr.bf16.gmra.mrb[0].mxu0 %v980
  %v1249 = vpop.f32.mrb[0].mxu0
  %v1250 = vadd.f32 %v693, %v1249
  %v1251 = vpop.f32.mrb[0].mxu0
  %v1252 = vpop.f32.mrb[0].mxu0
  %v1253 = vadd.f32 %v696, %v1252
  %v1254 = vpop.f32.mrb[0].mxu0
  %1255 = vmatprep.mubr.bf16.mxu0 0
  %1256 = vmatmul.mubr.bf16.gmra.mrb[0].mxu0 %v983
  %v1257 = vpop.f32.mrb[0].mxu0
  %v1258 = vadd.f32 %v701, %v1257
  %v1259 = vpop.f32.mrb[0].mxu0
  %v1260 = vpop.f32.mrb[0].mxu0
  %v1261 = vadd.f32 %v704, %v1260
  %v1262 = vpop.f32.mrb[0].mxu0
  %1263 = vmatprep.mubr.bf16.mxu0 0
  %1264 = vmatmul.mubr.bf16.gmra.mrb[0].mxu0 %v986
  %v1265 = vpop.f32.mrb[0].mxu0
  %v1266 = vadd.f32 %v709, %v1265
  %v1267 = vpop.f32.mrb[0].mxu0
  %v1268 = vpop.f32.mrb[0].mxu0
  %v1269 = vadd.f32 %v712, %v1268
  %v1270 = vpop.f32.mrb[0].mxu0
  %1271 = vmatprep.mubr.bf16.mxu0 0
  %1272 = vmatmul.mubr.bf16.gmra.mrb[0].mxu0 %v989
  %v1273 = vpop.f32.mrb[0].mxu0
  %v1274 = vadd.f32 %v717, %v1273
  %v1275 = vpop.f32.mrb[0].mxu0
  %v1276 = vpop.f32.mrb[0].mxu0
  %v1277 = vadd.f32 %v720, %v1276
  %v1278 = vpop.f32.mrb[0].mxu0
  %1279 = vdwg.mxu0
  %v1280 = vld [vmem:[%s4] sm:$0x1]
  %v1282 = vlaneseq
  %v1283 = vshrl.u32 %v1282, 7
  %v1284 = vsub.s32 0, %v1283
  %v1285 = vrot.slane %v1280, %v1284
  %v1287 = vadd.f32 %v1026, %v1285
  %v1288 = vadd.f32 %v1029, %v1285
  %v1289 = vadd.f32 %v1034, %v1285
  %v1290 = vadd.f32 %v1037, %v1285
  %v1291 = vadd.f32 %v1042, %v1285
  %v1292 = vadd.f32 %v1045, %v1285
  %v1293 = vadd.f32 %v1050, %v1285
  %v1294 = vadd.f32 %v1053, %v1285
  %v1295 = vadd.f32 %v1058, %v1285
  %v1296 = vadd.f32 %v1061, %v1285
  %v1297 = vadd.f32 %v1066, %v1285
  %v1298 = vadd.f32 %v1069, %v1285
  %v1299 = vadd.f32 %v1074, %v1285
  %v1300 = vadd.f32 %v1077, %v1285
  %v1301 = vadd.f32 %v1082, %v1285
  %v1302 = vadd.f32 %v1085, %v1285
  %v1303 = vadd.f32 %v1090, %v1285
  %v1304 = vadd.f32 %v1093, %v1285
  %v1305 = vadd.f32 %v1098, %v1285
  %v1306 = vadd.f32 %v1101, %v1285
  %v1307 = vadd.f32 %v1106, %v1285
  %v1308 = vadd.f32 %v1109, %v1285
  %v1309 = vadd.f32 %v1114, %v1285
  %v1310 = vadd.f32 %v1117, %v1285
  %v1311 = vadd.f32 %v1122, %v1285
  %v1312 = vadd.f32 %v1125, %v1285
  %v1313 = vadd.f32 %v1130, %v1285
  %v1314 = vadd.f32 %v1133, %v1285
  %v1315 = vadd.f32 %v1138, %v1285
  %v1316 = vadd.f32 %v1141, %v1285
  %v1317 = vadd.f32 %v1146, %v1285
  %v1318 = vadd.f32 %v1149, %v1285
  %v1319 = vadd.f32 %v1154, %v1285
  %v1320 = vadd.f32 %v1157, %v1285
  %v1321 = vadd.f32 %v1162, %v1285
  %v1322 = vadd.f32 %v1165, %v1285
  %v1323 = vadd.f32 %v1170, %v1285
  %v1324 = vadd.f32 %v1173, %v1285
  %v1325 = vadd.f32 %v1178, %v1285
  %v1326 = vadd.f32 %v1181, %v1285
  %v1327 = vadd.f32 %v1186, %v1285
  %v1328 = vadd.f32 %v1189, %v1285
  %v1329 = vadd.f32 %v1194, %v1285
  %v1330 = vadd.f32 %v1197, %v1285
  %v1331 = vadd.f32 %v1202, %v1285
  %v1332 = vadd.f32 %v1205, %v1285
  %v1333 = vadd.f32 %v1210, %v1285
  %v1334 = vadd.f32 %v1213, %v1285
  %v1335 = vadd.f32 %v1218, %v1285
  %v1336 = vadd.f32 %v1221, %v1285
  %v1337 = vadd.f32 %v1226, %v1285
  %v1338 = vadd.f32 %v1229, %v1285
  %v1339 = vadd.f32 %v1234, %v1285
  %v1340 = vadd.f32 %v1237, %v1285
  %v1341 = vadd.f32 %v1242, %v1285
  %v1342 = vadd.f32 %v1245, %v1285
  %v1343 = vadd.f32 %v1250, %v1285
  %v1344 = vadd.f32 %v1253, %v1285
  %v1345 = vadd.f32 %v1258, %v1285
  %v1346 = vadd.f32 %v1261, %v1285
  %v1347 = vadd.f32 %v1266, %v1285
  %v1348 = vadd.f32 %v1269, %v1285
  %v1349 = vadd.f32 %v1274, %v1285
  %v1350 = vadd.f32 %v1277, %v1285
  %v1351 = vmax.f32 %v1287, 0.0
  %v1352 = vmax.f32 %v1288, 0.0
  %v1353 = vmax.f32 %v1289, 0.0
  %v1354 = vmax.f32 %v1290, 0.0
  %v1355 = vmax.f32 %v1291, 0.0
  %v1356 = vmax.f32 %v1292, 0.0
  %v1357 = vmax.f32 %v1293, 0.0
  %v1358 = vmax.f32 %v1294, 0.0
  %v1359 = vmax.f32 %v1295, 0.0
  %v1360 = vmax.f32 %v1296, 0.0
  %v1361 = vmax.f32 %v1297, 0.0
  %v1362 = vmax.f32 %v1298, 0.0
  %v1363 = vmax.f32 %v1299, 0.0
  %v1364 = vmax.f32 %v1300, 0.0
  %v1365 = vmax.f32 %v1301, 0.0
  %v1366 = vmax.f32 %v1302, 0.0
  %v1367 = vmax.f32 %v1303, 0.0
  %v1368 = vmax.f32 %v1304, 0.0
  %v1369 = vmax.f32 %v1305, 0.0
  %v1370 = vmax.f32 %v1306, 0.0
  %v1371 = vmax.f32 %v1307, 0.0
  %v1372 = vmax.f32 %v1308, 0.0
  %v1373 = vmax.f32 %v1309, 0.0
  %v1374 = vmax.f32 %v1310, 0.0
  %v1375 = vmax.f32 %v1311, 0.0
  %v1376 = vmax.f32 %v1312, 0.0
  %v1377 = vmax.f32 %v1313, 0.0
  %v1378 = vmax.f32 %v1314, 0.0
  %v1379 = vmax.f32 %v1315, 0.0
  %v1380 = vmax.f32 %v1316, 0.0
  %v1381 = vmax.f32 %v1317, 0.0
  %v1382 = vmax.f32 %v1318, 0.0
  %v1383 = vmax.f32 %v1319, 0.0
  %v1384 = vmax.f32 %v1320, 0.0
  %v1385 = vmax.f32 %v1321, 0.0
  %v1386 = vmax.f32 %v1322, 0.0
  %v1387 = vmax.f32 %v1323, 0.0
  %v1388 = vmax.f32 %v1324, 0.0
  %v1389 = vmax.f32 %v1325, 0.0
  %v1390 = vmax.f32 %v1326, 0.0
  %v1391 = vmax.f32 %v1327, 0.0
  %v1392 = vmax.f32 %v1328, 0.0
  %v1393 = vmax.f32 %v1329, 0.0
  %v1394 = vmax.f32 %v1330, 0.0
  %v1395 = vmax.f32 %v1331, 0.0
  %v1396 = vmax.f32 %v1332, 0.0
  %v1397 = vmax.f32 %v1333, 0.0
  %v1398 = vmax.f32 %v1334, 0.0
  %v1399 = vmax.f32 %v1335, 0.0
  %v1400 = vmax.f32 %v1336, 0.0
  %v1401 = vmax.f32 %v1337, 0.0
  %v1402 = vmax.f32 %v1338, 0.0
  %v1403 = vmax.f32 %v1339, 0.0
  %v1404 = vmax.f32 %v1340, 0.0
  %v1405 = vmax.f32 %v1341, 0.0
  %v1406 = vmax.f32 %v1342, 0.0
  %v1407 = vmax.f32 %v1343, 0.0
  %v1408 = vmax.f32 %v1344, 0.0
  %v1409 = vmax.f32 %v1345, 0.0
  %v1410 = vmax.f32 %v1346, 0.0
  %v1411 = vmax.f32 %v1347, 0.0
  %v1412 = vmax.f32 %v1348, 0.0
  %v1413 = vmax.f32 %v1349, 0.0
  %v1414 = vmax.f32 %v1350, 0.0
  %v1415 = vpack.c.bf16 %v1352, %v1351
  %v1416 = vpack.c.bf16 %v1354, %v1353
  %v1417 = vpack.c.bf16 %v1356, %v1355
  %v1418 = vpack.c.bf16 %v1358, %v1357
  %v1419 = vpack.c.bf16 %v1360, %v1359
  %v1420 = vpack.c.bf16 %v1362, %v1361
  %v1421 = vpack.c.bf16 %v1364, %v1363
  %v1422 = vpack.c.bf16 %v1366, %v1365
  %v1423 = vpack.c.bf16 %v1368, %v1367
  %v1424 = vpack.c.bf16 %v1370, %v1369
  %v1425 = vpack.c.bf16 %v1372, %v1371
  %v1426 = vpack.c.bf16 %v1374, %v1373
  %v1427 = vpack.c.bf16 %v1376, %v1375
  %v1428 = vpack.c.bf16 %v1378, %v1377
  %v1429 = vpack.c.bf16 %v1380, %v1379
  %v1430 = vpack.c.bf16 %v1382, %v1381
  %v1431 = vpack.c.bf16 %v1384, %v1383
  %v1432 = vpack.c.bf16 %v1386, %v1385
  %v1433 = vpack.c.bf16 %v1388, %v1387
  %v1434 = vpack.c.bf16 %v1390, %v1389
  %v1435 = vpack.c.bf16 %v1392, %v1391
  %v1436 = vpack.c.bf16 %v1394, %v1393
  %v1437 = vpack.c.bf16 %v1396, %v1395
  %v1438 = vpack.c.bf16 %v1398, %v1397
  %v1439 = vpack.c.bf16 %v1400, %v1399
  %v1440 = vpack.c.bf16 %v1402, %v1401
  %v1441 = vpack.c.bf16 %v1404, %v1403
  %v1442 = vpack.c.bf16 %v1406, %v1405
  %v1443 = vpack.c.bf16 %v1408, %v1407
  %v1444 = vpack.c.bf16 %v1410, %v1409
  %v1445 = vpack.c.bf16 %v1412, %v1411
  %v1446 = vpack.c.bf16 %v1414, %v1413
  %v1447 = vld [vmem:[%s5] sm:$0x1]
  %v1448 = vld [vmem:[#allocation2] sm:$0x1]
  %1450 = vset.pattern.permute.xlu0 0
  %1451 = vperm.xlu0 %1450, %v1448
  %v1452 = vpop.permute.xlu0 %1451
  %v1454 = vlaneseq
  %v1455 = vshrl.u32 %v1454, 7
  %v1456 = vsub.s32 0, %v1455
  %v1457 = vrot.slane %v1452, %v1456
  %v1459 = vsel %vm337, %v1447, 0
  %v1462 = vsel %vm337, %v1415, 0
  %v1465 = vsel %vm337, %v1416, 0
  %v1468 = vsel %vm337, %v1417, 0
  %v1471 = vsel %vm337, %v1418, 0
  %v1474 = vsel %vm337, %v1419, 0
  %v1477 = vsel %vm337, %v1420, 0
  %v1480 = vsel %vm337, %v1421, 0
  %v1483 = vsel %vm337, %v1422, 0
  %v1486 = vsel %vm337, %v1423, 0
  %v1489 = vsel %vm337, %v1424, 0
  %v1492 = vsel %vm337, %v1425, 0
  %v1495 = vsel %vm337, %v1426, 0
  %v1498 = vsel %vm337, %v1427, 0
  %v1501 = vsel %vm337, %v1428, 0
  %v1504 = vsel %vm337, %v1429, 0
  %v1507 = vsel %vm337, %v1430, 0
  %v1510 = vsel %vm337, %v1431, 0
  %v1513 = vsel %vm337, %v1432, 0
  %v1516 = vsel %vm337, %v1433, 0
  %v1519 = vsel %vm337, %v1434, 0
  %v1522 = vsel %vm337, %v1435, 0
  %v1525 = vsel %vm337, %v1436, 0
  %v1528 = vsel %vm337, %v1437, 0
  %v1531 = vsel %vm337, %v1438, 0
  %v1534 = vsel %vm337, %v1439, 0
  %v1537 = vsel %vm337, %v1440, 0
  %v1540 = vsel %vm337, %v1441, 0
  %v1543 = vsel %vm337, %v1442, 0
  %v1546 = vsel %vm337, %v1443, 0
  %v1549 = vsel %vm337, %v1444, 0
  %v1552 = vsel %vm337, %v1445, 0
  %v1555 = vsel %vm337, %v1446, 0
  %1557 = vmatprep.subr.bf16.mxu0 0
  %1558 = vmatpush1.bf16.xpose.msra.mxu0 %v1462
  %1559 = vmatprep.subr.bf16.mxu0 0
  %1560 = vmatpush1.bf16.xpose.msra.mxu0 %v1465
  %1561 = vmatprep.subr.bf16.mxu0 0
  %1562 = vmatpush1.bf16.xpose.msra.mxu0 %v1468
  %1563 = vmatprep.subr.bf16.mxu0 0
  %1564 = vmatpush1.bf16.xpose.msra.mxu0 %v1471
  %1565 = vmatprep.subr.bf16.mxu0 0
  %1566 = vmatpush1.bf16.xpose.msra.mxu0 %v1474
  %1567 = vmatprep.subr.bf16.mxu0 0
  %1568 = vmatpush1.bf16.xpose.msra.mxu0 %v1477
  %1569 = vmatprep.subr.bf16.mxu0 0
  %1570 = vmatpush1.bf16.xpose.msra.mxu0 %v1480
  %1571 = vmatprep.subr.bf16.mxu0 0
  %1572 = vmatpush1.bf16.xpose.msra.mxu0 %v1483
  %1573 = vmatprep.subr.bf16.mxu0 0
  %1574 = vmatpush1.bf16.xpose.msra.mxu0 %v1486
  %1575 = vmatprep.subr.bf16.mxu0 0
  %1576 = vmatpush1.bf16.xpose.msra.mxu0 %v1489
  %1577 = vmatprep.subr.bf16.mxu0 0
  %1578 = vmatpush1.bf16.xpose.msra.mxu0 %v1492
  %1579 = vmatprep.subr.bf16.mxu0 0
  %1580 = vmatpush1.bf16.xpose.msra.mxu0 %v1495
  %1581 = vmatprep.subr.bf16.mxu0 0
  %1582 = vmatpush1.bf16.xpose.msra.mxu0 %v1498
  %1583 = vmatprep.subr.bf16.mxu0 0
  %1584 = vmatpush1.bf16.xpose.msra.mxu0 %v1501
  %1585 = vmatprep.subr.bf16.mxu0 0
  %1586 = vmatpush1.bf16.xpose.msra.mxu0 %v1504
  %1587 = vmatprep.subr.bf16.mxu0 0
  %1588 = vmatpush1.bf16.xpose.msra.mxu0 %v1507
  %1589 = vmatprep.mubr.bf16.mxu0 0
  %1590 = vmatmul.mubr.bf16.gmra.mrb[0].mxu0 %v1459
  %v1591 = vpop.f32.mrb[0].mxu0
  %v1592 = vadd.f32 %v1457, %v1591
  %v1593 = vpop.f32.mrb[0].mxu0
  %v1594 = vadd.f32 %v1457, %v1593
  %v1595 = vpop.f32.mrb[0].mxu0
  %v1596 = vpop.f32.mrb[0].mxu0
  %1597 = vdwg.mxu0
  %1598 = vmatprep.subr.bf16.mxu0 0
  %1599 = vmatpush1.bf16.xpose.msra.mxu0 %v1510
  %1600 = vmatprep.subr.bf16.mxu0 0
  %1601 = vmatpush1.bf16.xpose.msra.mxu0 %v1513
  %1602 = vmatprep.subr.bf16.mxu0 0
  %1603 = vmatpush1.bf16.xpose.msra.mxu0 %v1516
  %1604 = vmatprep.subr.bf16.mxu0 0
  %1605 = vmatpush1.bf16.xpose.msra.mxu0 %v1519
  %1606 = vmatprep.subr.bf16.mxu0 0
  %1607 = vmatpush1.bf16.xpose.msra.mxu0 %v1522
  %1608 = vmatprep.subr.bf16.mxu0 0
  %1609 = vmatpush1.bf16.xpose.msra.mxu0 %v1525
  %1610 = vmatprep.subr.bf16.mxu0 0
  %1611 = vmatpush1.bf16.xpose.msra.mxu0 %v1528
  %1612 = vmatprep.subr.bf16.mxu0 0
  %1613 = vmatpush1.bf16.xpose.msra.mxu0 %v1531
  %1614 = vmatprep.subr.bf16.mxu0 0
  %1615 = vmatpush1.bf16.xpose.msra.mxu0 %v1534
  %1616 = vmatprep.subr.bf16.mxu0 0
  %1617 = vmatpush1.bf16.xpose.msra.mxu0 %v1537
  %1618 = vmatprep.subr.bf16.mxu0 0
  %1619 = vmatpush1.bf16.xpose.msra.mxu0 %v1540
  %1620 = vmatprep.subr.bf16.mxu0 0
  %1621 = vmatpush1.bf16.xpose.msra.mxu0 %v1543
  %1622 = vmatprep.subr.bf16.mxu0 0
  %1623 = vmatpush1.bf16.xpose.msra.mxu0 %v1546
  %1624 = vmatprep.subr.bf16.mxu0 0
  %1625 = vmatpush1.bf16.xpose.msra.mxu0 %v1549
  %1626 = vmatprep.subr.bf16.mxu0 0
  %1627 = vmatpush1.bf16.xpose.msra.mxu0 %v1552
  %1628 = vmatprep.subr.bf16.mxu0 0
  %1629 = vmatpush1.bf16.xpose.msra.mxu0 %v1555
  %1630 = vmatprep.mubr.bf16.mxu0 0
  %1631 = vmatmul.mubr.bf16.gmra.mrb[0].mxu0 %v1459
  %v1632 = vpop.f32.mrb[0].mxu0
  %v1633 = vadd.f32 %v1457, %v1632
  %v1634 = vpop.f32.mrb[0].mxu0
  %v1635 = vadd.f32 %v1457, %v1634
  %v1636 = vpop.f32.mrb[0].mxu0
  %v1637 = vpop.f32.mrb[0].mxu0
  %1638 = vdwg.mxu0
  %v1643 = vcombine.low %v1592, %v1594
  %v1644 = vcombine.low %v1633, %v1635
  %v1646 = vunpack.c.l.s4 1966171168
  %v1647 = vunpack.c.0.s8 %v1646
  %v1648 = vlaneseq
  %v1649 = vshrl.u32 %v1648, 7
  %v1650 = vsub.s32 %v1647, %v1649
  %v1651 = vrot.slane %v1643, %v1650
  %v1653 = vunpack.c.l.s4 1966171168
  %v1654 = vunpack.c.0.s8 %v1653
  %v1655 = vlaneseq
  %v1656 = vshrl.u32 %v1655, 7
  %v1657 = vsub.s32 %v1654, %v1656
  %v1658 = vrot.slane %v1644, %v1657
  %v1659 = vcombine.low %v1651, %v1658
  %v1661 = vunpack.c.l.s4 1966171168
  %v1662 = vunpack.c.0.s8 %v1661
  %v1663 = vlaneseq
  %v1664 = vshrl.u32 %v1663, 7
  %v1665 = vsub.s32 %v1662, %v1664
  %v1666 = vrot.slane %v1659, %v1665
  %v1668 = vlaneseq
  %vm1669 = vcmp.ge.s32.totalorder %v1668, 0
  %vm1670 = vcmp.lt.s32.totalorder %v1668, 512
  %vm1671 = vmand %vm1669, %vm1670
  %1672 = vst.msk [vmem:[%s7] sm:$0xf] %vm1671, %v1666
  // Predicated region
  $region30: #{mlp_predictor_forward.1} parent=0 // pred_check
    _
  $region31: #{mlp_predictor_forward.1} parent=0 // pred_check_branch
    %1674 = sbr.rel (0) target = $region33
  $region32: #{mlp_predictor_forward.1} parent=0 // pred_region
    _
  $region33: #{mlp_predictor_forward.1} parent=0 // pred_fallthru
    _
  // Predicated region
  $region34: #{mlp_predictor_forward.1} parent=0 // pred_check
    _
  $region35: #{mlp_predictor_forward.1} parent=0 // pred_check_branch
    %1676 = sbr.rel (0) target = $region37
  $region36: #{mlp_predictor_forward.1} parent=0 // pred_region
    _
  $region37: #{mlp_predictor_forward.1} parent=0 // pred_fallthru
    _

</llo_original>
